<compile_context>
chip_gen: v7x
topology: tpu7x:2x2x1
jax: 0.10.0
libtpu: 0.0.40
codegen_flags: <defaults>
</compile_context>

<pallas_src>
import math
import functools

import jax
import jax.numpy as jnp
from jax.experimental import pallas as pl
from jax.experimental.pallas import tpu as pltpu

LANE = 128
SUBLANE = 8


def _round_up(x, m):
    return ((x + m - 1) // m) * m


def _make_conv_bn_act_kernel(KH, KW, H_out, W_out, cin_pad, tco, use_bn, act_func):
    hw = H_out * W_out

    def kernel(*refs):
        if use_bn:
            x_ref, w_ref, scale_ref, shift_ref, o_ref, acc_ref = refs
        else:
            x_ref, w_ref, o_ref, acc_ref = refs
            scale_ref = shift_ref = None

        kh = pl.program_id(2)  # reduction axis over kernel rows (innermost)

        @pl.when(kh == 0)
        def _init():
            acc_ref[...] = jnp.zeros_like(acc_ref)

        # x_ref : (Hp, Wp, cin_pad)   (batch dim squeezed)
        # w_ref : (KW, cin_pad, tco)  (kh dim squeezed, already (in, out) lane-dense)
        for kw in range(KW):  # tiny static unroll (KW == kernel_size)
            xwin = x_ref[pl.ds(kh, H_out), pl.ds(kw, W_out), :]     # (H_out, W_out, cin_pad)
            xmat = xwin.reshape(hw, cin_pad)
            acc_ref[...] += jnp.dot(xmat, w_ref[kw],
                                    preferred_element_type=jnp.float32)

        @pl.when(kh == KH - 1)
        def _finish():
            y = acc_ref[...]
            if use_bn:
                y = y * scale_ref[...] + shift_ref[...]            # folded eval-mode BN
            if act_func == "relu6":
                y = jnp.clip(y, 0.0, 6.0)
            elif act_func == "relu":
                y = jnp.maximum(y, 0.0)
            # act_func None -> identity
            o_ref[...] = y.reshape(H_out, W_out, tco).astype(o_ref.dtype)

    return kernel


def dynamic_conv_layer_forward(x_nchw, weight_kkio, scale_pad, shift_pad, *,
                               kernel_size, stride, dilation, out_channel,
                               use_bn=True, act_func="relu6"):
    """Forward of DynamicConvLayer (conv -> BN -> act) with dynamic in/out channels.

    x_nchw      : (N, in_channel, H, W)  with in_channel <= max_in_channels
    weight_kkio : (k, k, max_in_pad8, max_out_pad128)  pre-transposed / pre-padded
    scale_pad   : (1, max_out_pad128)  folded BN scale  (or None if use_bn=False)
    shift_pad   : (1, max_out_pad128)  folded BN shift  (or None if use_bn=False)
    """
    assert stride == 1 and dilation == 1, "TODO(synk): stride/dilation > 1 not supported"
    N, cin, H, W = x_nchw.shape
    KH = KW = kernel_size
    pad = kernel_size // 2                     # get_same_padding(kernel_size)
    H_out, W_out = H, W
    Hp, Wp = H + 2 * pad, W + 2 * pad

    cin_pad = _round_up(cin, SUBLANE)
    max_in_pad = weight_kkio.shape[2]
    cout_store = weight_kkio.shape[3]
    assert cin_pad <= max_in_pad and out_channel <= cout_store

    tco = LANE
    n_co = pl.cdiv(out_channel, tco)
    cout_run = n_co * tco                      # lane-dense (multiple of 128) output slab

    # Layout glue: NCHW -> NHWC, spatial zero-pad for 'same' conv, pad channels to x8.
    x = jnp.transpose(x_nchw, (0, 2, 3, 1))
    x = jnp.pad(x, ((0, 0), (pad, pad), (pad, pad), (0, cin_pad - cin)))

    kernel = _make_conv_bn_act_kernel(KH, KW, H_out, W_out, cin_pad, tco,
                                      use_bn, act_func)

    # Active weight slice (in-channels, out-channel tile) is taken straight out of the
    # max-sized pre-transposed weight by the BlockSpec DMA -- no wrapper-side slice.
    x_spec = pl.BlockSpec((pl.Squeezed(), Hp, Wp, cin_pad),
                          lambda n, co, kh: (n, 0, 0, 0))
    w_spec = pl.BlockSpec((pl.Squeezed(), KW, cin_pad, tco),
                          lambda n, co, kh: (kh, 0, 0, co))
    o_spec = pl.BlockSpec((pl.Squeezed(), H_out, W_out, tco),
                          lambda n, co, kh: (n, 0, 0, co))

    in_specs = [x_spec, w_spec]
    inputs = [x, weight_kkio]
    if use_bn:
        s_spec = pl.BlockSpec((1, tco), lambda n, co, kh: (0, co))
        in_specs += [s_spec, s_spec]
        inputs += [scale_pad, shift_pad]

    out_shape = jax.ShapeDtypeStruct((N, H_out, W_out, cout_run), x_nchw.dtype)

    itemsize = jnp.dtype(x_nchw.dtype).itemsize
    flops = 2 * N * H_out * W_out * KH * KW * cin_pad * cout_run
    bytes_accessed = int((x.size
                          + KH * KW * cin_pad * cout_run
                          + N * H_out * W_out * cout_run) * itemsize)

    y = pl.pallas_call(
        kernel,
        out_shape=out_shape,
        grid_spec=pltpu.PrefetchScalarGridSpec(
            num_scalar_prefetch=0,
            grid=(N, n_co, KH),                       # kh reduction innermost
            in_specs=in_specs,
            out_specs=o_spec,
            scratch_shapes=[pltpu.VMEM((H_out * W_out, tco), jnp.float32)],
        ),
        compiler_params=pltpu.CompilerParams(
            dimension_semantics=("parallel", "parallel", "arbitrary"),
            vmem_limit_bytes=48 * 1024 * 1024,
        ),
        cost_estimate=pl.CostEstimate(flops=flops, transcendentals=0,
                                      bytes_accessed=bytes_accessed),
    )(*inputs)

    # Drop padded out channels and return NCHW like the torch module.
    y = y[..., :out_channel]
    return jnp.transpose(y, (0, 3, 1, 2))


class DynamicConvLayerPallas:
    """Mirror of DynamicConvLayer(in_channel_list, out_channel_list, kernel_size,
    stride, dilation, use_bn, act_func) -- inference-mode forward."""

    def __init__(self, in_channel_list, out_channel_list, kernel_size=3, stride=1,
                 dilation=1, use_bn=True, act_func="relu6", key=None):
        self.in_channel_list = in_channel_list
        self.out_channel_list = out_channel_list
        self.kernel_size = kernel_size
        self.stride = stride
        self.dilation = dilation
        self.use_bn = use_bn
        self.act_func = act_func

        max_in = max(in_channel_list)
        max_out = max(out_channel_list)
        self.max_in_channels = max_in
        self.max_out_channels = max_out
        self.active_out_channel = max_out

        if key is None:
            key = jax.random.PRNGKey(0)
        kw_key, kbn_key = jax.random.split(key)

        # torch.nn.Conv2d default init (kaiming-uniform-ish), no bias.
        fan_in = max_in * kernel_size * kernel_size
        bound = 1.0 / math.sqrt(fan_in)
        w_oihw = jax.random.uniform(
            kw_key, (max_out, max_in, kernel_size, kernel_size),
            minval=-bound, maxval=bound, dtype=jnp.float32)
        self.weight_oihw = w_oihw   # kept only for reference checks / subnet export

        # One-time pre-transpose + pad at init: (k, k, max_in_pad8, max_out_pad128).
        max_in_pad = _round_up(max_in, SUBLANE)
        cout_store = _round_up(max_out, LANE)
        w_kkio = jnp.transpose(w_oihw, (2, 3, 1, 0))
        self.weight_kkio = jnp.pad(
            w_kkio,
            ((0, 0), (0, 0), (0, max_in_pad - max_in), (0, cout_store - max_out)))

        if use_bn:
            k1, k2, k3, k4 = jax.random.split(kbn_key, 4)
            self.bn_gamma = jax.random.uniform(k1, (max_out,), minval=0.5, maxval=1.5,
                                               dtype=jnp.float32)
            self.bn_beta = 0.1 * jax.random.normal(k2, (max_out,), dtype=jnp.float32)
            self.bn_mean = 0.1 * jax.random.normal(k3, (max_out,), dtype=jnp.float32)
            self.bn_var = jax.random.uniform(k4, (max_out,), minval=0.5, maxval=1.5,
                                             dtype=jnp.float32)
            self.bn_eps = 1e-5
            scale = self.bn_gamma / jnp.sqrt(self.bn_var + self.bn_eps)
            shift = self.bn_beta - self.bn_mean * scale
            self.scale_pad = jnp.zeros((1, cout_store), jnp.float32).at[0, :max_out].set(scale)
            self.shift_pad = jnp.zeros((1, cout_store), jnp.float32).at[0, :max_out].set(shift)
        else:
            self.scale_pad = None
            self.shift_pad = None

    def __call__(self, x, out_channel=None):
        if out_channel is None:
            out_channel = self.active_out_channel
        return dynamic_conv_layer_forward(
            x, self.weight_kkio, self.scale_pad, self.shift_pad,
            kernel_size=self.kernel_size, stride=self.stride, dilation=self.dilation,
            out_channel=out_channel, use_bn=self.use_bn, act_func=self.act_func)


if __name__ == "__main__":
    key = jax.random.PRNGKey(0)
    k_layer, k_x = jax.random.split(key)

    in_channel_list = [8, 16]     # max_in_channels = 16
    out_channel_list = [8, 16]    # max_out_channels = 16 (active_out_channel default)
    layer = DynamicConvLayerPallas(in_channel_list, out_channel_list,
                                   kernel_size=3, stride=1, dilation=1,
                                   use_bn=True, act_func="relu6", key=k_layer)

    batch, active_in, H, W = 2, 8, 16, 16   # dynamic in_channel = 8 < max_in = 16
    x = jax.random.normal(k_x, (batch, active_in, H, W), dtype=jnp.float32)

    y = layer(x)
    y = jax.block_until_ready(y)

    # Reference check (plain JAX, full precision).
    out_ch = layer.active_out_channel
    w_active = layer.weight_oihw[:out_ch, :active_in]
    y_ref = jax.lax.conv_general_dilated(
        x, w_active, window_strides=(1, 1), padding=((1, 1), (1, 1)),
        dimension_numbers=("NCHW", "OIHW", "NCHW"),
        precision=jax.lax.Precision.HIGHEST)
    scale = layer.bn_gamma[:out_ch] / jnp.sqrt(layer.bn_var[:out_ch] + layer.bn_eps)
    shift = layer.bn_beta[:out_ch] - layer.bn_mean[:out_ch] * scale
    y_ref = y_ref * scale[None, :, None, None] + shift[None, :, None, None]
    y_ref = jnp.clip(y_ref, 0.0, 6.0)

    assert y.shape == (batch, out_ch, H, W)
    err = float(jnp.max(jnp.abs(y - y_ref)))
    assert jnp.allclose(y, y_ref, atol=1e-3, rtol=1e-3), f"max abs err {err}"

    print("KERNEL_OK")
</pallas_src>

<mosaic_0001>
module attributes {stable_mosaic.version = 11 : i64} {
  func.func @kernel(%arg0: i32, %arg1: i32, %arg2: i32, %arg3: memref<1x18x18x8xf32, #tpu.memory_space<vmem>>, %arg4: memref<1x3x8x128xf32, #tpu.memory_space<vmem>>, %arg5: memref<1x128xf32, #tpu.memory_space<vmem>>, %arg6: memref<1x128xf32, #tpu.memory_space<vmem>>, %arg7: memref<1x16x16x128xf32, #tpu.memory_space<vmem>>, %arg8: memref<256x128xf32, #tpu.memory_space<vmem>>) attributes {dimension_semantics = [#tpu.dimension_semantics<parallel>, #tpu.dimension_semantics<parallel>, #tpu.dimension_semantics<arbitrary>], iteration_bounds = array<i64: 2, 1, 3>, scalar_prefetch = 0 : i64, scratch_operands = 1 : i64, tpu.core_type = #tpu.core_type<tc>, window_params = [{transform_indices = @transform_0, window_bounds = array<i64: 1, 18, 18, 8>}, {transform_indices = @transform_1, window_bounds = array<i64: 1, 3, 8, 128>}, {transform_indices = @transform_2, window_bounds = array<i64: 1, 128>}, {transform_indices = @transform_3, window_bounds = array<i64: 1, 128>}, {transform_indices = @transform_4, window_bounds = array<i64: 1, 16, 16, 128>}]} {
    %c0_i32 = arith.constant 0 : i32
    %0 = arith.cmpi eq, %arg2, %c0_i32 : i32
    %1 = arith.extui %0 : i1 to i32
    %c0_i32_0 = arith.constant 0 : i32
    %2 = arith.cmpi ne, %1, %c0_i32_0 : i32
    scf.if %2 {
      %cst_34 = arith.constant 0.000000e+00 : f32
      %36 = vector.broadcast %cst_34 : f32 to vector<256x128xf32>
      %c0_35 = arith.constant 0 : index
      %c0_36 = arith.constant 0 : index
      %37 = vector.load %arg8[%c0_35, %c0_36] : memref<256x128xf32, #tpu.memory_space<vmem>>, vector<256x128xf32>
      tpu.vector_store %arg8[%c0_35, %c0_36], %36 {strides = array<i32>} : memref<256x128xf32, #tpu.memory_space<vmem>>, vector<256x128xf32>,
    } else {
    }
    %c0 = arith.constant 0 : index
    %3 = arith.index_cast %arg2 : i32 to index
    %c0_1 = arith.constant 0 : index
    %c0_2 = arith.constant 0 : index
    %4 = vector.load %arg3[%c0, %3, %c0_1, %c0_2] : memref<1x18x18x8xf32, #tpu.memory_space<vmem>>, vector<1x16x16x8xf32>
    %5 = vector.shape_cast %4 : vector<1x16x16x8xf32> to vector<16x16x8xf32>
    %6 = vector.shape_cast %5 : vector<16x16x8xf32> to vector<256x8xf32>
    %c0_3 = arith.constant 0 : index
    %c0_4 = arith.constant 0 : index
    %7 = vector.load %arg8[%c0_3, %c0_4] : memref<256x128xf32, #tpu.memory_space<vmem>>, vector<256x128xf32>
    %c0_5 = arith.constant 0 : index
    %c0_6 = arith.constant 0 : index
    %c0_7 = arith.constant 0 : index
    %c0_8 = arith.constant 0 : index
    %8 = vector.load %arg4[%c0_5, %c0_6, %c0_7, %c0_8] : memref<1x3x8x128xf32, #tpu.memory_space<vmem>>, vector<1x1x8x128xf32>
    %9 = vector.shape_cast %8 : vector<1x1x8x128xf32> to vector<8x128xf32>
    %cst = arith.constant dense<0.000000e+00> : vector<256x128xf32>
    %10 = tpu.matmul %6, %9, %cst {dimension_numbers = #tpu.dot_dimension_numbers<[1], [0], [0], [1], [0, 0, 1, 1], [], []>} : vector<256x8xf32>, vector<8x128xf32>, vector<256x128xf32> -> vector<256x128xf32>
    %11 = arith.addf %7, %10 : vector<256x128xf32>
    %c0_9 = arith.constant 0 : index
    %c0_10 = arith.constant 0 : index
    %12 = vector.load %arg8[%c0_9, %c0_10] : memref<256x128xf32, #tpu.memory_space<vmem>>, vector<256x128xf32>
    tpu.vector_store %arg8[%c0_9, %c0_10], %11 {strides = array<i32>} : memref<256x128xf32, #tpu.memory_space<vmem>>, vector<256x128xf32>,
    %c0_11 = arith.constant 0 : index
    %13 = arith.index_cast %arg2 : i32 to index
    %c1 = arith.constant 1 : index
    %c0_12 = arith.constant 0 : index
    %14 = vector.load %arg3[%c0_11, %13, %c1, %c0_12] : memref<1x18x18x8xf32, #tpu.memory_space<vmem>>, vector<1x16x16x8xf32>
    %15 = vector.shape_cast %14 : vector<1x16x16x8xf32> to vector<16x16x8xf32>
    %16 = vector.shape_cast %15 : vector<16x16x8xf32> to vector<256x8xf32>
    %c0_13 = arith.constant 0 : index
    %c0_14 = arith.constant 0 : index
    %17 = vector.load %arg8[%c0_13, %c0_14] : memref<256x128xf32, #tpu.memory_space<vmem>>, vector<256x128xf32>
    %c0_15 = arith.constant 0 : index
    %c1_16 = arith.constant 1 : index
    %c0_17 = arith.constant 0 : index
    %c0_18 = arith.constant 0 : index
    %18 = vector.load %arg4[%c0_15, %c1_16, %c0_17, %c0_18] : memref<1x3x8x128xf32, #tpu.memory_space<vmem>>, vector<1x1x8x128xf32>
    %19 = vector.shape_cast %18 : vector<1x1x8x128xf32> to vector<8x128xf32>
    %cst_19 = arith.constant dense<0.000000e+00> : vector<256x128xf32>
    %20 = tpu.matmul %16, %19, %cst_19 {dimension_numbers = #tpu.dot_dimension_numbers<[1], [0], [0], [1], [0, 0, 1, 1], [], []>} : vector<256x8xf32>, vector<8x128xf32>, vector<256x128xf32> -> vector<256x128xf32>
    %21 = arith.addf %17, %20 : vector<256x128xf32>
    %c0_20 = arith.constant 0 : index
    %c0_21 = arith.constant 0 : index
    %22 = vector.load %arg8[%c0_20, %c0_21] : memref<256x128xf32, #tpu.memory_space<vmem>>, vector<256x128xf32>
    tpu.vector_store %arg8[%c0_20, %c0_21], %21 {strides = array<i32>} : memref<256x128xf32, #tpu.memory_space<vmem>>, vector<256x128xf32>,
    %c0_22 = arith.constant 0 : index
    %23 = arith.index_cast %arg2 : i32 to index
    %c2 = arith.constant 2 : index
    %c0_23 = arith.constant 0 : index
    %24 = vector.load %arg3[%c0_22, %23, %c2, %c0_23] : memref<1x18x18x8xf32, #tpu.memory_space<vmem>>, vector<1x16x16x8xf32>
    %25 = vector.shape_cast %24 : vector<1x16x16x8xf32> to vector<16x16x8xf32>
    %26 = vector.shape_cast %25 : vector<16x16x8xf32> to vector<256x8xf32>
    %c0_24 = arith.constant 0 : index
    %c0_25 = arith.constant 0 : index
    %27 = vector.load %arg8[%c0_24, %c0_25] : memref<256x128xf32, #tpu.memory_space<vmem>>, vector<256x128xf32>
    %c0_26 = arith.constant 0 : index
    %c2_27 = arith.constant 2 : index
    %c0_28 = arith.constant 0 : index
    %c0_29 = arith.constant 0 : index
    %28 = vector.load %arg4[%c0_26, %c2_27, %c0_28, %c0_29] : memref<1x3x8x128xf32, #tpu.memory_space<vmem>>, vector<1x1x8x128xf32>
    %29 = vector.shape_cast %28 : vector<1x1x8x128xf32> to vector<8x128xf32>
    %cst_30 = arith.constant dense<0.000000e+00> : vector<256x128xf32>
    %30 = tpu.matmul %26, %29, %cst_30 {dimension_numbers = #tpu.dot_dimension_numbers<[1], [0], [0], [1], [0, 0, 1, 1], [], []>} : vector<256x8xf32>, vector<8x128xf32>, vector<256x128xf32> -> vector<256x128xf32>
    %31 = arith.addf %27, %30 : vector<256x128xf32>
    %c0_31 = arith.constant 0 : index
    %c0_32 = arith.constant 0 : index
    %32 = vector.load %arg8[%c0_31, %c0_32] : memref<256x128xf32, #tpu.memory_space<vmem>>, vector<256x128xf32>
    tpu.vector_store %arg8[%c0_31, %c0_32], %31 {strides = array<i32>} : memref<256x128xf32, #tpu.memory_space<vmem>>, vector<256x128xf32>,
    %c2_i32 = arith.constant 2 : i32
    %33 = arith.cmpi eq, %arg2, %c2_i32 : i32
    %34 = arith.extui %33 : i1 to i32
    %c0_i32_33 = arith.constant 0 : i32
    %35 = arith.cmpi ne, %34, %c0_i32_33 : i32
    scf.if %35 {
      %c0_34 = arith.constant 0 : index
      %c0_35 = arith.constant 0 : index
      %36 = vector.load %arg8[%c0_34, %c0_35] : memref<256x128xf32, #tpu.memory_space<vmem>>, vector<256x128xf32>
      %c0_36 = arith.constant 0 : index
      %c0_37 = arith.constant 0 : index
      %37 = vector.load %arg5[%c0_36, %c0_37] : memref<1x128xf32, #tpu.memory_space<vmem>>, vector<1x128xf32>
      %38 = vector.broadcast %37 : vector<1x128xf32> to vector<256x128xf32>
      %39 = arith.mulf %36, %38 : vector<256x128xf32>
      %c0_38 = arith.constant 0 : index
      %c0_39 = arith.constant 0 : index
      %40 = vector.load %arg6[%c0_38, %c0_39] : memref<1x128xf32, #tpu.memory_space<vmem>>, vector<1x128xf32>
      %41 = vector.broadcast %40 : vector<1x128xf32> to vector<256x128xf32>
      %42 = arith.addf %39, %41 : vector<256x128xf32>
      %cst_40 = arith.constant 0.000000e+00 : f32
      %cst_41 = arith.constant 6.000000e+00 : f32
      %43 = vector.broadcast %cst_40 : f32 to vector<256x128xf32>
      %44 = arith.maximumf %43, %42 : vector<256x128xf32>
      %45 = vector.broadcast %cst_41 : f32 to vector<256x128xf32>
      %46 = arith.minimumf %45, %44 : vector<256x128xf32>
      %47 = vector.shape_cast %46 : vector<256x128xf32> to vector<16x16x128xf32>
      %c0_42 = arith.constant 0 : index
      %c0_43 = arith.constant 0 : index
      %c0_44 = arith.constant 0 : index
      %c0_45 = arith.constant 0 : index
      %48 = vector.load %arg7[%c0_42, %c0_43, %c0_44, %c0_45] : memref<1x16x16x128xf32, #tpu.memory_space<vmem>>, vector<1x16x16x128xf32>
      %49 = vector.shape_cast %48 : vector<1x16x16x128xf32> to vector<16x16x128xf32>
      %50 = vector.shape_cast %47 : vector<16x16x128xf32> to vector<1x16x16x128xf32>
      tpu.vector_store %arg7[%c0_42, %c0_43, %c0_44, %c0_45], %50 {strides = array<i32>} : memref<1x16x16x128xf32, #tpu.memory_space<vmem>>, vector<1x16x16x128xf32>,
    } else {
    }
    return
  }
  func.func @transform_0(%arg0: i32, %arg1: i32, %arg2: i32) -> (i32, i32, i32, i32) {
    %c0_i32 = arith.constant 0 : i32
    %c0_i32_0 = arith.constant 0 : i32
    %c0_i32_1 = arith.constant 0 : i32
    %c0_i32_2 = arith.constant 0 : i32
    return %arg0, %c0_i32, %c0_i32_0, %c0_i32_1 : i32, i32, i32, i32
  }
  func.func @transform_1(%arg0: i32, %arg1: i32, %arg2: i32) -> (i32, i32, i32, i32) {
    %c0_i32 = arith.constant 0 : i32
    %c0_i32_0 = arith.constant 0 : i32
    %c0_i32_1 = arith.constant 0 : i32
    return %arg2, %c0_i32, %c0_i32_0, %arg1 : i32, i32, i32, i32
  }
  func.func @transform_2(%arg0: i32, %arg1: i32, %arg2: i32) -> (i32, i32) {
    %c0_i32 = arith.constant 0 : i32
    %c0_i32_0 = arith.constant 0 : i32
    return %c0_i32, %arg1 : i32, i32
  }
  func.func @transform_3(%arg0: i32, %arg1: i32, %arg2: i32) -> (i32, i32) {
    %c0_i32 = arith.constant 0 : i32
    %c0_i32_0 = arith.constant 0 : i32
    return %c0_i32, %arg1 : i32, i32
  }
  func.func @transform_4(%arg0: i32, %arg1: i32, %arg2: i32) -> (i32, i32, i32, i32) {
    %c0_i32 = arith.constant 0 : i32
    %c0_i32_0 = arith.constant 0 : i32
    %c0_i32_1 = arith.constant 0 : i32
    return %arg0, %c0_i32, %c0_i32_0, %arg1 : i32, i32, i32, i32
  }
}

</mosaic_0001>

<llo_original>
// kernel: tpu_custom_call.1
$region0: #{tpu_custom_call.1}
  #allocation0 [shape = 'u32[]', space=smem, size = 0x4, offset = 0x4, fixed_abs, tag = 'smem constant byte address 0x4 - core index']
  #allocation1 [shape = 'u32[144,128]{1,0:T(1,128)}', space=vmem, size = 0x12000, scoped, tag = 'internal scratch']
  #allocation2 [shape = 'f32[256,128]{1,0:T(8,128)}', space=vmem, size = 0x20000, scoped, tag = 'scratch operand']
  %s0 = inlined_call_operand.vmem [shape: f32[2,18,18,8], index: 0, kind: input, shape index: {}]
  %s1 = inlined_call_operand.vmem [shape: f32[3,3,16,128], index: 1, kind: input, shape index: {}]
  %s2 = inlined_call_operand.vmem [shape: f32[1,128], index: 2, kind: input, shape index: {}]
  %s3 = inlined_call_operand.vmem [shape: f32[1,128], index: 3, kind: input, shape index: {}]
  %s4 = inlined_call_operand.hbm [shape: f32[2,16,16,128], index: 4, kind: output, shape index: {}]
  %s5 = sld [smem:[#allocation0]]
  $region95: #{tpu_custom_call.1} parent=0
    _
  %s7 = ssub.s32 1, %s5
  %s8 = scalar_select 0, %s7, %s5
  $region1: #{tpu_custom_call.1} parent=0
    #allocation3 [shape = 'u8[24576]{0}', space=vmem, size = 0x6000, scoped, tag = 'input window, operand 1']
    #allocation4 [shape = 'u8[262144]{0}', space=vmem, size = 0x40000, scoped, tag = 'output window, operand 0']
    #allocation5 [shape = 's32[2]{0}', space=sflag, size = 0x8, scoped, tag = 'scoped memory for tpu_custom_call.1']
    %9 = vsyncpa [#allocation5], 0
    %s10 = scalar_lea.sflag [#allocation5], 1
    %11 = vsyncpa %s10, 0
    loop: start=0, step=1, limit=8
    $region2: #{tpu_custom_call.1} parent=1 // loop_pre_header
      _
    $region3: #{tpu_custom_call.1} parent=1 // loop_header
      %s13 = sphi 0, %s17
      %p14 = scmp.ge.s32.totalorder %s13, 8
      %s20 = sphi 0, %s39
      %s21 = sphi 0, %s35
      %s22 = sphi 0, %s31
      %s23 = sphi 0, %s20
      %s24 = sphi 0, %s21
      %s25 = sphi 0, %s22
      %s26 = sphi 0, %s23
      %s27 = sphi 0, %s24
      %s28 = sphi 0, %s25
      %s42 = sphi 0, %s44
      %s45 = sphi 0, %s42
      %s46 = sphi 0, %s45
      %s62 = sphi 0, %s46
      %s70 = sphi 0, %s72
      %s73 = sphi 0, %s70
      %s74 = sphi 0, %s73
      %s90 = sphi 0, %s74
      %s96 = sphi 0, %s98
      %s99 = sphi 0, %s96
      %s100 = sphi 0, %s99
      %s116 = sphi 0, %s100
      %s122 = sphi 0, %s124
      %s125 = sphi 0, %s122
      %s126 = sphi 0, %s125
      %s142 = sphi 0, %s126
      %s150 = sphi 0, %s152
      %s153 = sphi 0, %s150
      %s154 = sphi 0, %s153
      %s170 = sphi 0, %s154
    $region4: #{tpu_custom_call.1} parent=1 // loop_header_branch
      %16 = sbr.rel (%p14) target = $region8
    $region5: #{tpu_custom_call.1} parent=1 // loop_body
      %s18 = ssub.s32 %s13, 1
      %s19 = ssub.s32 %s13, 2
      %s29 = sadd.s32 1, %s22
      %p30 = scmp.ge.s32.totalorder %s29, 3
      %s31 = scalar_select %p30, 0, %s29
      %s32 = sadd.s32 1, %s21
      %s33 = scalar_select %p30, %s32, %s21
      %p34 = scmp.ge.s32.totalorder %s33, 1
      %s35 = scalar_select %p34, 0, %s33
      %s36 = sadd.s32 1, %s20
      %s37 = scalar_select %p34, %s36, %s20
      %p38 = scmp.ge.s32.totalorder %s37, 2
      %s39 = scalar_select %p38, 0, %s37
      %s40 = ssub.s32 %s20, %s39
      %p41 = scmp.eq.s32.totalorder %s40, 0
      %s43 = sadd.s32 %s42, 1
      %s44 = scalar_select %p41, %s42, %s43
      %p47 = pneg %p41
      %p48 = scmp.eq.s32.totalorder %s13, 5
      %p49 = por %p47, %p48
      %p50 = scmp.ne.s32.totalorder %s42, %s45
      %p51 = scmp.eq.s32.totalorder %s13, 0
      %p52 = por %p50, %p51
      %p53 = scmp.ne.s32.totalorder %s42, %s45
      %p54 = scmp.eq.s32.totalorder %s18, 5
      %p55 = por %p53, %p54
      %p56 = scmp.ne.s32.totalorder %s45, %s46
      %p57 = scmp.eq.s32.totalorder %s18, 0
      %p58 = por %p56, %p57
      %p59 = scmp.ne.s32.totalorder %s45, %s46
      %p60 = scmp.eq.s32.totalorder %s19, 5
      %p61 = por %p59, %p60
      %p63 = scmp.ne.s32.totalorder %s46, %s62
      %p64 = scmp.eq.s32.totalorder %s19, 0
      %p65 = por %p63, %p64
      %s66 = ssub.s32 %s22, %s31
      %s67 = ssub.s32 %s21, %s35
      %s68 = sor.u32 %s66, %s67
      %p69 = scmp.eq.s32.totalorder %s68, 0
      %s71 = sadd.s32 %s70, 1
      %s72 = scalar_select %p69, %s70, %s71
      %p75 = pneg %p69
      %p76 = scmp.eq.s32.totalorder %s13, 5
      %p77 = por %p75, %p76
      %p78 = scmp.ne.s32.totalorder %s70, %s73
      %p79 = scmp.eq.s32.totalorder %s13, 0
      %p80 = por %p78, %p79
      %p81 = scmp.ne.s32.totalorder %s70, %s73
      %p82 = scmp.eq.s32.totalorder %s18, 5
      %p83 = por %p81, %p82
      %p84 = scmp.ne.s32.totalorder %s73, %s74
      %p85 = scmp.eq.s32.totalorder %s18, 0
      %p86 = por %p84, %p85
      %p87 = scmp.ne.s32.totalorder %s73, %s74
      %p88 = scmp.eq.s32.totalorder %s19, 5
      %p89 = por %p87, %p88
      %p91 = scmp.ne.s32.totalorder %s74, %s90
      %p92 = scmp.eq.s32.totalorder %s19, 0
      %p93 = por %p91, %p92
      %s94 = ssub.s32 %s21, %s35
      %p95 = scmp.eq.s32.totalorder %s94, 0
      %s97 = sadd.s32 %s96, 1
      %s98 = scalar_select %p95, %s96, %s97
      %p101 = pneg %p95
      %p102 = scmp.eq.s32.totalorder %s13, 5
      %p103 = por %p101, %p102
      %p104 = scmp.ne.s32.totalorder %s96, %s99
      %p105 = scmp.eq.s32.totalorder %s13, 0
      %p106 = por %p104, %p105
      %p107 = scmp.ne.s32.totalorder %s96, %s99
      %p108 = scmp.eq.s32.totalorder %s18, 5
      %p109 = por %p107, %p108
      %p110 = scmp.ne.s32.totalorder %s99, %s100
      %p111 = scmp.eq.s32.totalorder %s18, 0
      %p112 = por %p110, %p111
      %p113 = scmp.ne.s32.totalorder %s99, %s100
      %p114 = scmp.eq.s32.totalorder %s19, 5
      %p115 = por %p113, %p114
      %p117 = scmp.ne.s32.totalorder %s100, %s116
      %p118 = scmp.eq.s32.totalorder %s19, 0
      %p119 = por %p117, %p118
      %s120 = ssub.s32 %s21, %s35
      %p121 = scmp.eq.s32.totalorder %s120, 0
      %s123 = sadd.s32 %s122, 1
      %s124 = scalar_select %p121, %s122, %s123
      %p127 = pneg %p121
      %p128 = scmp.eq.s32.totalorder %s13, 5
      %p129 = por %p127, %p128
      %p130 = scmp.ne.s32.totalorder %s122, %s125
      %p131 = scmp.eq.s32.totalorder %s13, 0
      %p132 = por %p130, %p131
      %p133 = scmp.ne.s32.totalorder %s122, %s125
      %p134 = scmp.eq.s32.totalorder %s18, 5
      %p135 = por %p133, %p134
      %p136 = scmp.ne.s32.totalorder %s125, %s126
      %p137 = scmp.eq.s32.totalorder %s18, 0
      %p138 = por %p136, %p137
      %p139 = scmp.ne.s32.totalorder %s125, %s126
      %p140 = scmp.eq.s32.totalorder %s19, 5
      %p141 = por %p139, %p140
      %p143 = scmp.ne.s32.totalorder %s126, %s142
      %p144 = scmp.eq.s32.totalorder %s19, 0
      %p145 = por %p143, %p144
      %s146 = ssub.s32 %s20, %s39
      %s147 = ssub.s32 %s21, %s35
      %s148 = sor.u32 %s146, %s147
      %p149 = scmp.eq.s32.totalorder %s148, 0
      %s151 = sadd.s32 %s150, 1
      %s152 = scalar_select %p149, %s150, %s151
      %p155 = pneg %p149
      %p156 = scmp.eq.s32.totalorder %s13, 5
      %p157 = por %p155, %p156
      %p158 = scmp.ne.s32.totalorder %s150, %s153
      %p159 = scmp.eq.s32.totalorder %s13, 0
      %p160 = por %p158, %p159
      %p161 = scmp.ne.s32.totalorder %s150, %s153
      %p162 = scmp.eq.s32.totalorder %s18, 5
      %p163 = por %p161, %p162
      %p164 = scmp.ne.s32.totalorder %s153, %s154
      %p165 = scmp.eq.s32.totalorder %s18, 0
      %p166 = por %p164, %p165
      %p167 = scmp.ne.s32.totalorder %s153, %s154
      %p168 = scmp.eq.s32.totalorder %s19, 5
      %p169 = por %p167, %p168
      %p171 = scmp.ne.s32.totalorder %s154, %s170
      %p172 = scmp.eq.s32.totalorder %s19, 0
      %p173 = por %p171, %p172
      %p174 = scmp.le.s32.totalorder 1, %s13
      %p175 = scmp.lt.s32.totalorder %s13, 7
      %p176 = pnand %p174, %p175
      %p177 = pneg %p176
      // Predicated region
      $region9: #{tpu_custom_call.1} parent=5 // pred_check
        _
      $region10: #{tpu_custom_call.1} parent=5 // pred_check_branch
        %179 = sbr.rel (%p176) target = $region12
      $region11: #{tpu_custom_call.1} parent=5 // pred_region
        %s180 = ssub.s32 %s13, 1
        // Predicated region
        $region13: #{tpu_custom_call.1} parent=11 // pred_check
          %p181 = pneg %p112
        $region14: #{tpu_custom_call.1} parent=11 // pred_check_branch
          %183 = sbr.rel (%p181) target = $region16
        $region15: #{tpu_custom_call.1} parent=11 // pred_region
          %p184 = scmp.lt.s32.totalorder %s24, 0
          %s185 = scalar_select %p184, %s24, 0
          %s186 = scalar_lea.vmem %s2, %s185
        $region16: #{tpu_custom_call.1} parent=11 // pred_fallthru
          _
        // Predicated region
        $region17: #{tpu_custom_call.1} parent=11 // pred_check
          %p187 = pneg %p138
        $region18: #{tpu_custom_call.1} parent=11 // pred_check_branch
          %189 = sbr.rel (%p187) target = $region20
        $region19: #{tpu_custom_call.1} parent=11 // pred_region
          %p190 = scmp.lt.s32.totalorder %s24, 0
          %s191 = scalar_select %p190, %s24, 0
          %s192 = scalar_lea.vmem %s3, %s191
        $region20: #{tpu_custom_call.1} parent=11 // pred_fallthru
          _
      $region12: #{tpu_custom_call.1} parent=5 // pred_fallthru
        _
      %p193 = scmp.lt.s32.totalorder %s13, 6
      // Predicated region
      $region21: #{tpu_custom_call.1} parent=5 // pred_check
        %p194 = pneg %p193
      $region22: #{tpu_custom_call.1} parent=5 // pred_check_branch
        %196 = sbr.rel (%p194) target = $region24
      $region23: #{tpu_custom_call.1} parent=5 // pred_region
        // Predicated region
        $region25: #{tpu_custom_call.1} parent=23 // pred_check
          %p197 = pneg %p52
        $region26: #{tpu_custom_call.1} parent=23 // pred_check_branch
          %199 = sbr.rel (%p197) target = $region28
        $region27: #{tpu_custom_call.1} parent=23 // pred_region
          %p200 = scmp.lt.s32.totalorder %s20, 1
          %s201 = scalar_select %p200, %s20, 1
          %s202 = smul.addr %s201, 54
          %s203 = smul.addr %s202, 8
          %s204 = scalar_lea.vmem %s0, %s203
        $region28: #{tpu_custom_call.1} parent=23 // pred_fallthru
          _
        // Predicated region
        $region29: #{tpu_custom_call.1} parent=23 // pred_check
          %p205 = pneg %p80
        $region30: #{tpu_custom_call.1} parent=23 // pred_check_branch
          %207 = sbr.rel (%p205) target = $region32
        $region31: #{tpu_custom_call.1} parent=23 // pred_region
          %s208 = sand.u32 %s70, 1
          %s209 = sand.u32 %s70, 1
          %s210 = smul.addr %s209, 24
          %s211 = scalar_lea.vmem [#allocation3], %s210
          %s212 = smul.addr %s22, 6
          %s213 = sadd.s32 %s21, %s212
          %s214 = smul.addr %s213, 8
          %s215 = scalar_lea.vmem %s1, %s214
          // Predicated region
          $region33: #{tpu_custom_call.1} parent=31 // pred_check
            _
          $region34: #{tpu_custom_call.1} parent=31 // pred_check_branch
            %217 = sbr.rel (0) target = $region36
          $region35: #{tpu_custom_call.1} parent=31 // pred_region
            // Predicated region
            $region37: #{tpu_custom_call.1} parent=35 // pred_check
              _
            $region38: #{tpu_custom_call.1} parent=35 // pred_check_branch
              %219 = sbr.rel (0) target = $region40
            $region39: #{tpu_custom_call.1} parent=35 // pred_region
              // Predicated region
              $region52: #{tpu_custom_call.1} parent=39 // pred_check
                _
              $region53: #{tpu_custom_call.1} parent=39 // pred_check_branch
                %238 = sbr.rel (0) target = $region55
              $region54: #{tpu_custom_call.1} parent=39 // pred_region
                loop: start=0, step=1, limit=1
                $region56: #{tpu_custom_call.1} parent=54 // loop_pre_header
                  _
                $region57: #{tpu_custom_call.1} parent=54 // loop_header
                  %s240 = sphi 0, %s244
                  %p241 = scmp.ge.s32.totalorder %s240, 1
                  %s245 = sphi %s215, %s215
                  %s246 = sphi %s211, %s211
                $region58: #{tpu_custom_call.1} parent=54 // loop_header_branch
                  %243 = sbr.rel (%p241) target = $region62
                $region59: #{tpu_custom_call.1} parent=54 // loop_body
                  %v247 = vld [vmem:[%s245] sm:$0xff]
                  %248 = vst [vmem:[%s246] sm:$0xff] %v247
                  %v249 = vld [vmem:[%s245 + $0x10] sm:$0xff]
                  %250 = vst [vmem:[%s246 + $0x8] sm:$0xff] %v249
                  %v251 = vld [vmem:[%s245 + $0x20] sm:$0xff]
                  %252 = vst [vmem:[%s246 + $0x10] sm:$0xff] %v251
                $region60: #{tpu_custom_call.1} parent=54 // loop_footer
                  %s244 = sadd.s32 1, %s240
                $region61: #{tpu_custom_call.1} parent=54 // loop_footer_branch
                  %239 = sbr.rel target = $region57
                $region62: #{tpu_custom_call.1} parent=54 // loop_exit
                  _
              $region55: #{tpu_custom_call.1} parent=39 // pred_fallthru
                _
              // Predicated region
              $region63: #{tpu_custom_call.1} parent=39 // pred_check
                _
              $region64: #{tpu_custom_call.1} parent=39 // pred_check_branch
                %254 = sbr.rel target = $region66
              $region65: #{tpu_custom_call.1} parent=39 // pred_region
                _
              $region66: #{tpu_custom_call.1} parent=39 // pred_fallthru
                _
            $region40: #{tpu_custom_call.1} parent=35 // pred_fallthru
              _
            // Predicated region
            $region41: #{tpu_custom_call.1} parent=35 // pred_check
              _
            $region42: #{tpu_custom_call.1} parent=35 // pred_check_branch
              %221 = sbr.rel target = $region44
            $region43: #{tpu_custom_call.1} parent=35 // pred_region
              loop: start=0, step=1, limit=1
              $region45: #{tpu_custom_call.1} parent=43 // loop_pre_header
                _
              $region46: #{tpu_custom_call.1} parent=43 // loop_header
                %s224 = sphi 0, %s228
                %p225 = scmp.ge.s32.totalorder %s224, 1
                %s229 = sphi %s215, %s215
                %s230 = sphi %s211, %s211
              $region47: #{tpu_custom_call.1} parent=43 // loop_header_branch
                %227 = sbr.rel (%p225) target = $region51
              $region48: #{tpu_custom_call.1} parent=43 // loop_body
                %v231 = vld [vmem:[%s229] sm:$0xff]
                %232 = vst [vmem:[%s230] sm:$0xff] %v231
                %v233 = vld [vmem:[%s229 + $0x10] sm:$0xff]
                %234 = vst [vmem:[%s230 + $0x8] sm:$0xff] %v233
                %v235 = vld [vmem:[%s229 + $0x20] sm:$0xff]
                %236 = vst [vmem:[%s230 + $0x10] sm:$0xff] %v235
              $region49: #{tpu_custom_call.1} parent=43 // loop_footer
                %s228 = sadd.s32 1, %s224
              $region50: #{tpu_custom_call.1} parent=43 // loop_footer_branch
                %223 = sbr.rel target = $region46
              $region51: #{tpu_custom_call.1} parent=43 // loop_exit
                _
            $region44: #{tpu_custom_call.1} parent=35 // pred_fallthru
              _
          $region36: #{tpu_custom_call.1} parent=31 // pred_fallthru
            _
          %255 = vnop
        $region32: #{tpu_custom_call.1} parent=23 // pred_fallthru
          _
      $region24: #{tpu_custom_call.1} parent=5 // pred_fallthru
        _
      %p256 = scmp.le.s32.totalorder 1, %s13
      %p257 = scmp.lt.s32.totalorder %s13, 7
      %p258 = pnand %p256, %p257
      %p259 = pneg %p258
      // Predicated region
      $region67: #{tpu_custom_call.1} parent=5 // pred_check
        _
      $region68: #{tpu_custom_call.1} parent=5 // pred_check_branch
        %261 = sbr.rel (%p258) target = $region70
      $region69: #{tpu_custom_call.1} parent=5 // pred_region
        %s262 = ssub.s32 %s13, 1
        %s263 = sand.u32 %s73, 1
        %s264 = sand.u32 %s73, 1
        %s265 = smul.addr %s264, 24
        %s266 = scalar_lea.vmem [#allocation3], %s265
        // Predicated region
        $region71: #{tpu_custom_call.1} parent=69 // pred_check
          %p267 = pneg %p86
        $region72: #{tpu_custom_call.1} parent=69 // pred_check_branch
          %269 = sbr.rel (%p267) target = $region74
        $region73: #{tpu_custom_call.1} parent=69 // pred_region
          _
        $region74: #{tpu_custom_call.1} parent=69 // pred_fallthru
          _
        %p270 = scmp.lt.s32.totalorder %s23, 1
        %s271 = scalar_select %p270, %s23, 1
        %s272 = smul.addr %s271, 54
        %s273 = smul.addr %s272, 8
        %s274 = scalar_lea.vmem %s0, %s273
        %p275 = pneg %p58
        %p276 = pneg %p55
        %s277 = sand.u32 %s73, 1
        %s278 = sand.u32 %s73, 1
        %s279 = smul.addr %s278, 24
        %s280 = scalar_lea.vmem [#allocation3], %s279
        %p281 = pneg %p86
        %p282 = pneg %p83
        %p283 = scmp.lt.s32.totalorder %s24, 0
        %s284 = scalar_select %p283, %s24, 0
        %s285 = scalar_lea.vmem %s2, %s284
        %p286 = pneg %p112
        %p287 = pneg %p109
        %p288 = scmp.lt.s32.totalorder %s24, 0
        %s289 = scalar_select %p288, %s24, 0
        %s290 = scalar_lea.vmem %s3, %s289
        %p291 = pneg %p138
        %p292 = pneg %p135
        %p293 = pneg %p166
        %p294 = pneg %p163
        %s295 = sand.u32 %s153, 1
        %s296 = scalar_lea.sflag [#allocation5], %s295
        %s297 = sand.u32 %s153, 1
        %s298 = smul.addr %s297, 256
        %s299 = scalar_lea.vmem [#allocation4], %s298
        %p300 = scmp.lt.s32.totalorder %s23, 1
        %s301 = scalar_select %p300, %s23, 1
        %s302 = smul.addr %s301, 54
        %s303 = smul.addr %s302, 8
        %s304 = scalar_lea.vmem %s0, %s303
        %p305 = scmp.lt.s32.totalorder %s24, 0
        %s306 = scalar_select %p305, %s24, 0
        %s307 = scalar_lea.vmem %s2, %s306
        %p308 = scmp.lt.s32.totalorder %s24, 0
        %s309 = scalar_select %p308, %s24, 0
        %s310 = scalar_lea.vmem %s3, %s309
        %p311 = scmp.eq.s32.totalorder %s25, 0
        // Predicated region
        $region75: #{tpu_custom_call.1} parent=69 // pred_check
          %p312 = pneg %p311
        $region76: #{tpu_custom_call.1} parent=69 // pred_check_branch
          %314 = sbr.rel (%p312) target = $region78
        $region77: #{tpu_custom_call.1} parent=69 // pred_region
          %315 = vst [vmem:[#allocation2] sm:$0xff] 0.0
          %316 = vst [vmem:[#allocation2 + $0x8] sm:$0xff] 0.0
          %317 = vst [vmem:[#allocation2 + $0x10] sm:$0xff] 0.0
          %318 = vst [vmem:[#allocation2 + $0x18] sm:$0xff] 0.0
          %319 = vst [vmem:[#allocation2 + $0x20] sm:$0xff] 0.0
          %320 = vst [vmem:[#allocation2 + $0x28] sm:$0xff] 0.0
          %321 = vst [vmem:[#allocation2 + $0x30] sm:$0xff] 0.0
          %322 = vst [vmem:[#allocation2 + $0x38] sm:$0xff] 0.0
          %323 = vst [vmem:[#allocation2 + $0x40] sm:$0xff] 0.0
          %324 = vst [vmem:[#allocation2 + $0x48] sm:$0xff] 0.0
          %325 = vst [vmem:[#allocation2 + $0x50] sm:$0xff] 0.0
          %326 = vst [vmem:[#allocation2 + $0x58] sm:$0xff] 0.0
          %327 = vst [vmem:[#allocation2 + $0x60] sm:$0xff] 0.0
          %328 = vst [vmem:[#allocation2 + $0x68] sm:$0xff] 0.0
          %329 = vst [vmem:[#allocation2 + $0x70] sm:$0xff] 0.0
          %330 = vst [vmem:[#allocation2 + $0x78] sm:$0xff] 0.0
          %331 = vst [vmem:[#allocation2 + $0x80] sm:$0xff] 0.0
          %332 = vst [vmem:[#allocation2 + $0x88] sm:$0xff] 0.0
          %333 = vst [vmem:[#allocation2 + $0x90] sm:$0xff] 0.0
          %334 = vst [vmem:[#allocation2 + $0x98] sm:$0xff] 0.0
          %335 = vst [vmem:[#allocation2 + $0xa0] sm:$0xff] 0.0
          %336 = vst [vmem:[#allocation2 + $0xa8] sm:$0xff] 0.0
          %337 = vst [vmem:[#allocation2 + $0xb0] sm:$0xff] 0.0
          %338 = vst [vmem:[#allocation2 + $0xb8] sm:$0xff] 0.0
          %339 = vst [vmem:[#allocation2 + $0xc0] sm:$0xff] 0.0
          %340 = vst [vmem:[#allocation2 + $0xc8] sm:$0xff] 0.0
          %341 = vst [vmem:[#allocation2 + $0xd0] sm:$0xff] 0.0
          %342 = vst [vmem:[#allocation2 + $0xd8] sm:$0xff] 0.0
          %343 = vst [vmem:[#allocation2 + $0xe0] sm:$0xff] 0.0
          %344 = vst [vmem:[#allocation2 + $0xe8] sm:$0xff] 0.0
          %345 = vst [vmem:[#allocation2 + $0xf0] sm:$0xff] 0.0
          %346 = vst [vmem:[#allocation2 + $0xf8] sm:$0xff] 0.0
        $region78: #{tpu_custom_call.1} parent=69 // pred_fallthru
          _
        %s347 = smul.u32 %s25, 24
        %s348 = scalar_lea.vmem %s304, %s347
        %v349 = vld [vmem:[%s348] sm:$0xff]
        %v350 = vld [vmem:[%s348 + $0x8] sm:$0xff]
        %v351 = vld [vmem:[%s348 + $0x18] sm:$0xff]
        %v352 = vld [vmem:[%s348 + $0x20] sm:$0xff]
        %v353 = vld [vmem:[%s348 + $0x30] sm:$0xff]
        %v354 = vld [vmem:[%s348 + $0x38] sm:$0xff]
        %v355 = vld [vmem:[%s348 + $0x48] sm:$0xff]
        %v356 = vld [vmem:[%s348 + $0x50] sm:$0xff]
        %v357 = vld [vmem:[%s348 + $0x60] sm:$0xff]
        %v358 = vld [vmem:[%s348 + $0x68] sm:$0xff]
        %v359 = vld [vmem:[%s348 + $0x78] sm:$0xff]
        %v360 = vld [vmem:[%s348 + $0x80] sm:$0xff]
        %v361 = vld [vmem:[%s348 + $0x90] sm:$0xff]
        %v362 = vld [vmem:[%s348 + $0x98] sm:$0xff]
        %v363 = vld [vmem:[%s348 + $0xa8] sm:$0xff]
        %v364 = vld [vmem:[%s348 + $0xb0] sm:$0xff]
        %v365 = vld [vmem:[%s348 + $0xc0] sm:$0xff]
        %v366 = vld [vmem:[%s348 + $0xc8] sm:$0xff]
        %v367 = vld [vmem:[%s348 + $0xd8] sm:$0xff]
        %v368 = vld [vmem:[%s348 + $0xe0] sm:$0xff]
        %v369 = vld [vmem:[%s348 + $0xf0] sm:$0xff]
        %v370 = vld [vmem:[%s348 + $0xf8] sm:$0xff]
        %v371 = vld [vmem:[%s348 + $0x108] sm:$0xff]
        %v372 = vld [vmem:[%s348 + $0x110] sm:$0xff]
        %v373 = vld [vmem:[%s348 + $0x120] sm:$0xff]
        %v374 = vld [vmem:[%s348 + $0x128] sm:$0xff]
        %v375 = vld [vmem:[%s348 + $0x138] sm:$0xff]
        %v376 = vld [vmem:[%s348 + $0x140] sm:$0xff]
        %v377 = vld [vmem:[%s348 + $0x150] sm:$0xff]
        %v378 = vld [vmem:[%s348 + $0x158] sm:$0xff]
        %v379 = vld [vmem:[%s348 + $0x168] sm:$0xff]
        %v380 = vld [vmem:[%s348 + $0x170] sm:$0xff]
        %v381 = vld [vmem:[#allocation2] sm:$0xff]
        %v382 = vld [vmem:[#allocation2 + $0x8] sm:$0xff]
        %v383 = vld [vmem:[#allocation2 + $0x10] sm:$0xff]
        %v384 = vld [vmem:[#allocation2 + $0x18] sm:$0xff]
        %v385 = vld [vmem:[#allocation2 + $0x20] sm:$0xff]
        %v386 = vld [vmem:[#allocation2 + $0x28] sm:$0xff]
        %v387 = vld [vmem:[#allocation2 + $0x30] sm:$0xff]
        %v388 = vld [vmem:[#allocation2 + $0x38] sm:$0xff]
        %v389 = vld [vmem:[#allocation2 + $0x40] sm:$0xff]
        %v390 = vld [vmem:[#allocation2 + $0x48] sm:$0xff]
        %v391 = vld [vmem:[#allocation2 + $0x50] sm:$0xff]
        %v392 = vld [vmem:[#allocation2 + $0x58] sm:$0xff]
        %v393 = vld [vmem:[#allocation2 + $0x60] sm:$0xff]
        %v394 = vld [vmem:[#allocation2 + $0x68] sm:$0xff]
        %v395 = vld [vmem:[#allocation2 + $0x70] sm:$0xff]
        %v396 = vld [vmem:[#allocation2 + $0x78] sm:$0xff]
        %v397 = vld [vmem:[#allocation2 + $0x80] sm:$0xff]
        %v398 = vld [vmem:[#allocation2 + $0x88] sm:$0xff]
        %v399 = vld [vmem:[#allocation2 + $0x90] sm:$0xff]
        %v400 = vld [vmem:[#allocation2 + $0x98] sm:$0xff]
        %v401 = vld [vmem:[#allocation2 + $0xa0] sm:$0xff]
        %v402 = vld [vmem:[#allocation2 + $0xa8] sm:$0xff]
        %v403 = vld [vmem:[#allocation2 + $0xb0] sm:$0xff]
        %v404 = vld [vmem:[#allocation2 + $0xb8] sm:$0xff]
        %v405 = vld [vmem:[#allocation2 + $0xc0] sm:$0xff]
        %v406 = vld [vmem:[#allocation2 + $0xc8] sm:$0xff]
        %v407 = vld [vmem:[#allocation2 + $0xd0] sm:$0xff]
        %v408 = vld [vmem:[#allocation2 + $0xd8] sm:$0xff]
        %v409 = vld [vmem:[#allocation2 + $0xe0] sm:$0xff]
        %v410 = vld [vmem:[#allocation2 + $0xe8] sm:$0xff]
        %v411 = vld [vmem:[#allocation2 + $0xf0] sm:$0xff]
        %v412 = vld [vmem:[#allocation2 + $0xf8] sm:$0xff]
        %v413 = vld [vmem:[%s266] sm:$0xff]
        %vm414 = vcmask 64512
        %v416 = vsel %vm414, %v349, 0
        %v419 = vsel %vm414, %v350, 0
        %v422 = vsel %vm414, %v351, 0
        %v425 = vsel %vm414, %v352, 0
        %v428 = vsel %vm414, %v353, 0
        %v431 = vsel %vm414, %v354, 0
        %v434 = vsel %vm414, %v355, 0
        %v437 = vsel %vm414, %v356, 0
        %v440 = vsel %vm414, %v357, 0
        %v443 = vsel %vm414, %v358, 0
        %v446 = vsel %vm414, %v359, 0
        %v449 = vsel %vm414, %v360, 0
        %v452 = vsel %vm414, %v361, 0
        %v455 = vsel %vm414, %v362, 0
        %v458 = vsel %vm414, %v363, 0
        %v461 = vsel %vm414, %v364, 0
        %v464 = vsel %vm414, %v365, 0
        %v467 = vsel %vm414, %v366, 0
        %v470 = vsel %vm414, %v367, 0
        %v473 = vsel %vm414, %v368, 0
        %v476 = vsel %vm414, %v369, 0
        %v479 = vsel %vm414, %v370, 0
        %v482 = vsel %vm414, %v371, 0
        %v485 = vsel %vm414, %v372, 0
        %v488 = vsel %vm414, %v373, 0
        %v491 = vsel %vm414, %v374, 0
        %v494 = vsel %vm414, %v375, 0
        %v497 = vsel %vm414, %v376, 0
        %v500 = vsel %vm414, %v377, 0
        %v503 = vsel %vm414, %v378, 0
        %v506 = vsel %vm414, %v379, 0
        %v509 = vsel %vm414, %v380, 0
        %511 = vmatprep.subr.mxu0 0.0
        %512 = vmatpush1.msra.mxu0 %v413
        %513 = vmatprep.subr.mxu0 0.0
        %514 = vmatpush1.msra.mxu0 0.0
        %515 = vmatprep.subr.mxu0 0.0
        %516 = vmatpush1.msra.mxu0 0.0
        %517 = vmatprep.subr.mxu0 0.0
        %518 = vmatpush1.msra.mxu0 0.0
        %519 = vmatprep.subr.mxu0 0.0
        %520 = vmatpush1.msra.mxu0 0.0
        %521 = vmatprep.subr.mxu0 0.0
        %522 = vmatpush1.msra.mxu0 0.0
        %523 = vmatprep.subr.mxu0 0.0
        %524 = vmatpush1.msra.mxu0 0.0
        %525 = vmatprep.subr.mxu0 0.0
        %526 = vmatpush1.msra.mxu0 0.0
        %527 = vmatprep.subr.mxu0 0.0
        %528 = vmatpush1.msra.mxu0 0.0
        %529 = vmatprep.subr.mxu0 0.0
        %530 = vmatpush1.msra.mxu0 0.0
        %531 = vmatprep.subr.mxu0 0.0
        %532 = vmatpush1.msra.mxu0 0.0
        %533 = vmatprep.subr.mxu0 0.0
        %534 = vmatpush1.msra.mxu0 0.0
        %535 = vmatprep.subr.mxu0 0.0
        %536 = vmatpush1.msra.mxu0 0.0
        %537 = vmatprep.subr.mxu0 0.0
        %538 = vmatpush1.msra.mxu0 0.0
        %539 = vmatprep.subr.mxu0 0.0
        %540 = vmatpush1.msra.mxu0 0.0
        %541 = vmatprep.subr.mxu0 0.0
        %542 = vmatpush1.msra.mxu0 0.0
        %543 = vmatprep.subr.mxu0 0.0
        %544 = vmatpush1.msra.mxu0 0.0
        %545 = vmatprep.subr.mxu0 0.0
        %546 = vmatpush1.msra.mxu0 0.0
        %547 = vmatprep.subr.mxu0 0.0
        %548 = vmatpush1.msra.mxu0 0.0
        %549 = vmatprep.subr.mxu0 0.0
        %550 = vmatpush1.msra.mxu0 0.0
        %551 = vmatprep.subr.mxu0 0.0
        %552 = vmatpush1.msra.mxu0 0.0
        %553 = vmatprep.subr.mxu0 0.0
        %554 = vmatpush1.msra.mxu0 0.0
        %555 = vmatprep.subr.mxu0 0.0
        %556 = vmatpush1.msra.mxu0 0.0
        %557 = vmatprep.subr.mxu0 0.0
        %558 = vmatpush1.msra.mxu0 0.0
        %559 = vmatprep.subr.mxu0 0.0
        %560 = vmatpush1.msra.mxu0 0.0
        %561 = vmatprep.subr.mxu0 0.0
        %562 = vmatpush1.msra.mxu0 0.0
        %563 = vmatprep.subr.mxu0 0.0
        %564 = vmatpush1.msra.mxu0 0.0
        %565 = vmatprep.subr.mxu0 0.0
        %566 = vmatpush1.msra.mxu0 0.0
        %567 = vmatprep.subr.mxu0 0.0
        %568 = vmatpush1.msra.mxu0 0.0
        %569 = vmatprep.subr.mxu0 0.0
        %570 = vmatpush1.msra.mxu0 0.0
        %571 = vmatprep.subr.mxu0 0.0
        %572 = vmatpush1.msra.mxu0 0.0
        %573 = vmatprep.subr.mxu0 0.0
        %574 = vmatpush1.msra.mxu0 0.0
        %575 = vmatprep.mubr.f32.mxu0 0.0
        %576 = vmatmul.mubr.f32.gmra.mrb[0].mxu0 %v416
        %v577 = vpop.f32.mrb[0].mxu0
        %v578 = vadd.f32 0.0, %v577
        %v579 = vpop.f32.mrb[0].mxu0
        %580 = vmatprep.mubr.f32.mxu0 0.0
        %581 = vmatmul.mubr.f32.gmra.mrb[0].mxu0 %v419
        %v582 = vpop.f32.mrb[0].mxu0
        %v583 = vadd.f32 0.0, %v582
        %v584 = vpop.f32.mrb[0].mxu0
        %585 = vmatprep.mubr.f32.mxu0 0.0
        %586 = vmatmul.mubr.f32.gmra.mrb[0].mxu0 %v422
        %v587 = vpop.f32.mrb[0].mxu0
        %v588 = vadd.f32 0.0, %v587
        %v589 = vpop.f32.mrb[0].mxu0
        %590 = vmatprep.mubr.f32.mxu0 0.0
        %591 = vmatmul.mubr.f32.gmra.mrb[0].mxu0 %v425
        %v592 = vpop.f32.mrb[0].mxu0
        %v593 = vadd.f32 0.0, %v592
        %v594 = vpop.f32.mrb[0].mxu0
        %595 = vmatprep.mubr.f32.mxu0 0.0
        %596 = vmatmul.mubr.f32.gmra.mrb[0].mxu0 %v428
        %v597 = vpop.f32.mrb[0].mxu0
        %v598 = vadd.f32 0.0, %v597
        %v599 = vpop.f32.mrb[0].mxu0
        %600 = vmatprep.mubr.f32.mxu0 0.0
        %601 = vmatmul.mubr.f32.gmra.mrb[0].mxu0 %v431
        %v602 = vpop.f32.mrb[0].mxu0
        %v603 = vadd.f32 0.0, %v602
        %v604 = vpop.f32.mrb[0].mxu0
        %605 = vmatprep.mubr.f32.mxu0 0.0
        %606 = vmatmul.mubr.f32.gmra.mrb[0].mxu0 %v434
        %v607 = vpop.f32.mrb[0].mxu0
        %v608 = vadd.f32 0.0, %v607
        %v609 = vpop.f32.mrb[0].mxu0
        %610 = vmatprep.mubr.f32.mxu0 0.0
        %611 = vmatmul.mubr.f32.gmra.mrb[0].mxu0 %v437
        %v612 = vpop.f32.mrb[0].mxu0
        %v613 = vadd.f32 0.0, %v612
        %v614 = vpop.f32.mrb[0].mxu0
        %615 = vmatprep.mubr.f32.mxu0 0.0
        %616 = vmatmul.mubr.f32.gmra.mrb[0].mxu0 %v440
        %v617 = vpop.f32.mrb[0].mxu0
        %v618 = vadd.f32 0.0, %v617
        %v619 = vpop.f32.mrb[0].mxu0
        %620 = vmatprep.mubr.f32.mxu0 0.0
        %621 = vmatmul.mubr.f32.gmra.mrb[0].mxu0 %v443
        %v622 = vpop.f32.mrb[0].mxu0
        %v623 = vadd.f32 0.0, %v622
        %v624 = vpop.f32.mrb[0].mxu0
        %625 = vmatprep.mubr.f32.mxu0 0.0
        %626 = vmatmul.mubr.f32.gmra.mrb[0].mxu0 %v446
        %v627 = vpop.f32.mrb[0].mxu0
        %v628 = vadd.f32 0.0, %v627
        %v629 = vpop.f32.mrb[0].mxu0
        %630 = vmatprep.mubr.f32.mxu0 0.0
        %631 = vmatmul.mubr.f32.gmra.mrb[0].mxu0 %v449
        %v632 = vpop.f32.mrb[0].mxu0
        %v633 = vadd.f32 0.0, %v632
        %v634 = vpop.f32.mrb[0].mxu0
        %635 = vmatprep.mubr.f32.mxu0 0.0
        %636 = vmatmul.mubr.f32.gmra.mrb[0].mxu0 %v452
        %v637 = vpop.f32.mrb[0].mxu0
        %v638 = vadd.f32 0.0, %v637
        %v639 = vpop.f32.mrb[0].mxu0
        %640 = vmatprep.mubr.f32.mxu0 0.0
        %641 = vmatmul.mubr.f32.gmra.mrb[0].mxu0 %v455
        %v642 = vpop.f32.mrb[0].mxu0
        %v643 = vadd.f32 0.0, %v642
        %v644 = vpop.f32.mrb[0].mxu0
        %645 = vmatprep.mubr.f32.mxu0 0.0
        %646 = vmatmul.mubr.f32.gmra.mrb[0].mxu0 %v458
        %v647 = vpop.f32.mrb[0].mxu0
        %v648 = vadd.f32 0.0, %v647
        %v649 = vpop.f32.mrb[0].mxu0
        %650 = vmatprep.mubr.f32.mxu0 0.0
        %651 = vmatmul.mubr.f32.gmra.mrb[0].mxu0 %v461
        %v652 = vpop.f32.mrb[0].mxu0
        %v653 = vadd.f32 0.0, %v652
        %v654 = vpop.f32.mrb[0].mxu0
        %655 = vmatprep.mubr.f32.mxu0 0.0
        %656 = vmatmul.mubr.f32.gmra.mrb[0].mxu0 %v464
        %v657 = vpop.f32.mrb[0].mxu0
        %v658 = vadd.f32 0.0, %v657
        %v659 = vpop.f32.mrb[0].mxu0
        %660 = vmatprep.mubr.f32.mxu0 0.0
        %661 = vmatmul.mubr.f32.gmra.mrb[0].mxu0 %v467
        %v662 = vpop.f32.mrb[0].mxu0
        %v663 = vadd.f32 0.0, %v662
        %v664 = vpop.f32.mrb[0].mxu0
        %665 = vmatprep.mubr.f32.mxu0 0.0
        %666 = vmatmul.mubr.f32.gmra.mrb[0].mxu0 %v470
        %v667 = vpop.f32.mrb[0].mxu0
        %v668 = vadd.f32 0.0, %v667
        %v669 = vpop.f32.mrb[0].mxu0
        %670 = vmatprep.mubr.f32.mxu0 0.0
        %671 = vmatmul.mubr.f32.gmra.mrb[0].mxu0 %v473
        %v672 = vpop.f32.mrb[0].mxu0
        %v673 = vadd.f32 0.0, %v672
        %v674 = vpop.f32.mrb[0].mxu0
        %675 = vmatprep.mubr.f32.mxu0 0.0
        %676 = vmatmul.mubr.f32.gmra.mrb[0].mxu0 %v476
        %v677 = vpop.f32.mrb[0].mxu0
        %v678 = vadd.f32 0.0, %v677
        %v679 = vpop.f32.mrb[0].mxu0
        %680 = vmatprep.mubr.f32.mxu0 0.0
        %681 = vmatmul.mubr.f32.gmra.mrb[0].mxu0 %v479
        %v682 = vpop.f32.mrb[0].mxu0
        %v683 = vadd.f32 0.0, %v682
        %v684 = vpop.f32.mrb[0].mxu0
        %685 = vmatprep.mubr.f32.mxu0 0.0
        %686 = vmatmul.mubr.f32.gmra.mrb[0].mxu0 %v482
        %v687 = vpop.f32.mrb[0].mxu0
        %v688 = vadd.f32 0.0, %v687
        %v689 = vpop.f32.mrb[0].mxu0
        %690 = vmatprep.mubr.f32.mxu0 0.0
        %691 = vmatmul.mubr.f32.gmra.mrb[0].mxu0 %v485
        %v692 = vpop.f32.mrb[0].mxu0
        %v693 = vadd.f32 0.0, %v692
        %v694 = vpop.f32.mrb[0].mxu0
        %695 = vmatprep.mubr.f32.mxu0 0.0
        %696 = vmatmul.mubr.f32.gmra.mrb[0].mxu0 %v488
        %v697 = vpop.f32.mrb[0].mxu0
        %v698 = vadd.f32 0.0, %v697
        %v699 = vpop.f32.mrb[0].mxu0
        %700 = vmatprep.mubr.f32.mxu0 0.0
        %701 = vmatmul.mubr.f32.gmra.mrb[0].mxu0 %v491
        %v702 = vpop.f32.mrb[0].mxu0
        %v703 = vadd.f32 0.0, %v702
        %v704 = vpop.f32.mrb[0].mxu0
        %705 = vmatprep.mubr.f32.mxu0 0.0
        %706 = vmatmul.mubr.f32.gmra.mrb[0].mxu0 %v494
        %v707 = vpop.f32.mrb[0].mxu0
        %v708 = vadd.f32 0.0, %v707
        %v709 = vpop.f32.mrb[0].mxu0
        %710 = vmatprep.mubr.f32.mxu0 0.0
        %711 = vmatmul.mubr.f32.gmra.mrb[0].mxu0 %v497
        %v712 = vpop.f32.mrb[0].mxu0
        %v713 = vadd.f32 0.0, %v712
        %v714 = vpop.f32.mrb[0].mxu0
        %715 = vmatprep.mubr.f32.mxu0 0.0
        %716 = vmatmul.mubr.f32.gmra.mrb[0].mxu0 %v500
        %v717 = vpop.f32.mrb[0].mxu0
        %v718 = vadd.f32 0.0, %v717
        %v719 = vpop.f32.mrb[0].mxu0
        %720 = vmatprep.mubr.f32.mxu0 0.0
        %721 = vmatmul.mubr.f32.gmra.mrb[0].mxu0 %v503
        %v722 = vpop.f32.mrb[0].mxu0
        %v723 = vadd.f32 0.0, %v722
        %v724 = vpop.f32.mrb[0].mxu0
        %725 = vmatprep.mubr.f32.mxu0 0.0
        %726 = vmatmul.mubr.f32.gmra.mrb[0].mxu0 %v506
        %v727 = vpop.f32.mrb[0].mxu0
        %v728 = vadd.f32 0.0, %v727
        %v729 = vpop.f32.mrb[0].mxu0
        %730 = vmatprep.mubr.f32.mxu0 0.0
        %731 = vmatmul.mubr.f32.gmra.mrb[0].mxu0 %v509
        %v732 = vpop.f32.mrb[0].mxu0
        %v733 = vadd.f32 0.0, %v732
        %v734 = vpop.f32.mrb[0].mxu0
        %735 = vdwg.mxu0
        %v736 = vadd.f32 %v381, %v578
        %v737 = vadd.f32 %v382, %v583
        %v738 = vadd.f32 %v383, %v588
        %v739 = vadd.f32 %v384, %v593
        %v740 = vadd.f32 %v385, %v598
        %v741 = vadd.f32 %v386, %v603
        %v742 = vadd.f32 %v387, %v608
        %v743 = vadd.f32 %v388, %v613
        %v744 = vadd.f32 %v389, %v618
        %v745 = vadd.f32 %v390, %v623
        %v746 = vadd.f32 %v391, %v628
        %v747 = vadd.f32 %v392, %v633
        %v748 = vadd.f32 %v393, %v638
        %v749 = vadd.f32 %v394, %v643
        %v750 = vadd.f32 %v395, %v648
        %v751 = vadd.f32 %v396, %v653
        %v752 = vadd.f32 %v397, %v658
        %v753 = vadd.f32 %v398, %v663
        %v754 = vadd.f32 %v399, %v668
        %v755 = vadd.f32 %v400, %v673
        %v756 = vadd.f32 %v401, %v678
        %v757 = vadd.f32 %v402, %v683
        %v758 = vadd.f32 %v403, %v688
        %v759 = vadd.f32 %v404, %v693
        %v760 = vadd.f32 %v405, %v698
        %v761 = vadd.f32 %v406, %v703
        %v762 = vadd.f32 %v407, %v708
        %v763 = vadd.f32 %v408, %v713
        %v764 = vadd.f32 %v409, %v718
        %v765 = vadd.f32 %v410, %v723
        %v766 = vadd.f32 %v411, %v728
        %v767 = vadd.f32 %v412, %v733
        %768 = vst [vmem:[#allocation2] sm:$0xff] %v736
        %769 = vst [vmem:[#allocation2 + $0x8] sm:$0xff] %v737
        %770 = vst [vmem:[#allocation2 + $0x10] sm:$0xff] %v738
        %771 = vst [vmem:[#allocation2 + $0x18] sm:$0xff] %v739
        %772 = vst [vmem:[#allocation2 + $0x20] sm:$0xff] %v740
        %773 = vst [vmem:[#allocation2 + $0x28] sm:$0xff] %v741
        %774 = vst [vmem:[#allocation2 + $0x30] sm:$0xff] %v742
        %775 = vst [vmem:[#allocation2 + $0x38] sm:$0xff] %v743
        %776 = vst [vmem:[#allocation2 + $0x40] sm:$0xff] %v744
        %777 = vst [vmem:[#allocation2 + $0x48] sm:$0xff] %v745
        %778 = vst [vmem:[#allocation2 + $0x50] sm:$0xff] %v746
        %779 = vst [vmem:[#allocation2 + $0x58] sm:$0xff] %v747
        %780 = vst [vmem:[#allocation2 + $0x60] sm:$0xff] %v748
        %781 = vst [vmem:[#allocation2 + $0x68] sm:$0xff] %v749
        %782 = vst [vmem:[#allocation2 + $0x70] sm:$0xff] %v750
        %783 = vst [vmem:[#allocation2 + $0x78] sm:$0xff] %v751
        %784 = vst [vmem:[#allocation2 + $0x80] sm:$0xff] %v752
        %785 = vst [vmem:[#allocation2 + $0x88] sm:$0xff] %v753
        %786 = vst [vmem:[#allocation2 + $0x90] sm:$0xff] %v754
        %787 = vst [vmem:[#allocation2 + $0x98] sm:$0xff] %v755
        %788 = vst [vmem:[#allocation2 + $0xa0] sm:$0xff] %v756
        %789 = vst [vmem:[#allocation2 + $0xa8] sm:$0xff] %v757
        %790 = vst [vmem:[#allocation2 + $0xb0] sm:$0xff] %v758
        %791 = vst [vmem:[#allocation2 + $0xb8] sm:$0xff] %v759
        %792 = vst [vmem:[#allocation2 + $0xc0] sm:$0xff] %v760
        %793 = vst [vmem:[#allocation2 + $0xc8] sm:$0xff] %v761
        %794 = vst [vmem:[#allocation2 + $0xd0] sm:$0xff] %v762
        %795 = vst [vmem:[#allocation2 + $0xd8] sm:$0xff] %v763
        %796 = vst [vmem:[#allocation2 + $0xe0] sm:$0xff] %v764
        %797 = vst [vmem:[#allocation2 + $0xe8] sm:$0xff] %v765
        %798 = vst [vmem:[#allocation2 + $0xf0] sm:$0xff] %v766
        %799 = vst [vmem:[#allocation2 + $0xf8] sm:$0xff] %v767
        %v800 = vld [vmem:[%s348 + $0x1] sm:$0xff]
        %v801 = vld [vmem:[%s348 + $0x9] sm:$0xff]
        %v802 = vld [vmem:[%s348 + $0x19] sm:$0xff]
        %v803 = vld [vmem:[%s348 + $0x21] sm:$0xff]
        %v804 = vld [vmem:[%s348 + $0x31] sm:$0xff]
        %v805 = vld [vmem:[%s348 + $0x39] sm:$0xff]
        %v806 = vld [vmem:[%s348 + $0x49] sm:$0xff]
        %v807 = vld [vmem:[%s348 + $0x51] sm:$0xff]
        %v808 = vld [vmem:[%s348 + $0x61] sm:$0xff]
        %v809 = vld [vmem:[%s348 + $0x69] sm:$0xff]
        %v810 = vld [vmem:[%s348 + $0x79] sm:$0xff]
        %v811 = vld [vmem:[%s348 + $0x81] sm:$0xff]
        %v812 = vld [vmem:[%s348 + $0x91] sm:$0xff]
        %v813 = vld [vmem:[%s348 + $0x99] sm:$0xff]
        %v814 = vld [vmem:[%s348 + $0xa9] sm:$0xff]
        %v815 = vld [vmem:[%s348 + $0xb1] sm:$0xff]
        %v816 = vld [vmem:[%s348 + $0xc1] sm:$0xff]
        %v817 = vld [vmem:[%s348 + $0xc9] sm:$0xff]
        %v818 = vld [vmem:[%s348 + $0xd9] sm:$0xff]
        %v819 = vld [vmem:[%s348 + $0xe1] sm:$0xff]
        %v820 = vld [vmem:[%s348 + $0xf1] sm:$0xff]
        %v821 = vld [vmem:[%s348 + $0xf9] sm:$0xff]
        %v822 = vld [vmem:[%s348 + $0x109] sm:$0xff]
        %v823 = vld [vmem:[%s348 + $0x111] sm:$0xff]
        %v824 = vld [vmem:[%s348 + $0x121] sm:$0xff]
        %v825 = vld [vmem:[%s348 + $0x129] sm:$0xff]
        %v826 = vld [vmem:[%s348 + $0x139] sm:$0xff]
        %v827 = vld [vmem:[%s348 + $0x141] sm:$0xff]
        %v828 = vld [vmem:[%s348 + $0x151] sm:$0xff]
        %v829 = vld [vmem:[%s348 + $0x159] sm:$0xff]
        %v830 = vld [vmem:[%s348 + $0x169] sm:$0xff]
        %v831 = vld [vmem:[%s348 + $0x171] sm:$0xff]
        %v832 = vld [vmem:[#allocation2] sm:$0xff]
        %v833 = vld [vmem:[#allocation2 + $0x8] sm:$0xff]
        %v834 = vld [vmem:[#allocation2 + $0x10] sm:$0xff]
        %v835 = vld [vmem:[#allocation2 + $0x18] sm:$0xff]
        %v836 = vld [vmem:[#allocation2 + $0x20] sm:$0xff]
        %v837 = vld [vmem:[#allocation2 + $0x28] sm:$0xff]
        %v838 = vld [vmem:[#allocation2 + $0x30] sm:$0xff]
        %v839 = vld [vmem:[#allocation2 + $0x38] sm:$0xff]
        %v840 = vld [vmem:[#allocation2 + $0x40] sm:$0xff]
        %v841 = vld [vmem:[#allocation2 + $0x48] sm:$0xff]
        %v842 = vld [vmem:[#allocation2 + $0x50] sm:$0xff]
        %v843 = vld [vmem:[#allocation2 + $0x58] sm:$0xff]
        %v844 = vld [vmem:[#allocation2 + $0x60] sm:$0xff]
        %v845 = vld [vmem:[#allocation2 + $0x68] sm:$0xff]
        %v846 = vld [vmem:[#allocation2 + $0x70] sm:$0xff]
        %v847 = vld [vmem:[#allocation2 + $0x78] sm:$0xff]
        %v848 = vld [vmem:[#allocation2 + $0x80] sm:$0xff]
        %v849 = vld [vmem:[#allocation2 + $0x88] sm:$0xff]
        %v850 = vld [vmem:[#allocation2 + $0x90] sm:$0xff]
        %v851 = vld [vmem:[#allocation2 + $0x98] sm:$0xff]
        %v852 = vld [vmem:[#allocation2 + $0xa0] sm:$0xff]
        %v853 = vld [vmem:[#allocation2 + $0xa8] sm:$0xff]
        %v854 = vld [vmem:[#allocation2 + $0xb0] sm:$0xff]
        %v855 = vld [vmem:[#allocation2 + $0xb8] sm:$0xff]
        %v856 = vld [vmem:[#allocation2 + $0xc0] sm:$0xff]
        %v857 = vld [vmem:[#allocation2 + $0xc8] sm:$0xff]
        %v858 = vld [vmem:[#allocation2 + $0xd0] sm:$0xff]
        %v859 = vld [vmem:[#allocation2 + $0xd8] sm:$0xff]
        %v860 = vld [vmem:[#allocation2 + $0xe0] sm:$0xff]
        %v861 = vld [vmem:[#allocation2 + $0xe8] sm:$0xff]
        %v862 = vld [vmem:[#allocation2 + $0xf0] sm:$0xff]
        %v863 = vld [vmem:[#allocation2 + $0xf8] sm:$0xff]
        %s864 = scalar_lea.vmem %s266, 8 [#allocation3]
        %v865 = vld [vmem:[%s864] sm:$0xff]
        %v867 = vsel %vm414, %v800, 0
        %v870 = vsel %vm414, %v801, 0
        %v873 = vsel %vm414, %v802, 0
        %v876 = vsel %vm414, %v803, 0
        %v879 = vsel %vm414, %v804, 0
        %v882 = vsel %vm414, %v805, 0
        %v885 = vsel %vm414, %v806, 0
        %v888 = vsel %vm414, %v807, 0
        %v891 = vsel %vm414, %v808, 0
        %v894 = vsel %vm414, %v809, 0
        %v897 = vsel %vm414, %v810, 0
        %v900 = vsel %vm414, %v811, 0
        %v903 = vsel %vm414, %v812, 0
        %v906 = vsel %vm414, %v813, 0
        %v909 = vsel %vm414, %v814, 0
        %v912 = vsel %vm414, %v815, 0
        %v915 = vsel %vm414, %v816, 0
        %v918 = vsel %vm414, %v817, 0
        %v921 = vsel %vm414, %v818, 0
        %v924 = vsel %vm414, %v819, 0
        %v927 = vsel %vm414, %v820, 0
        %v930 = vsel %vm414, %v821, 0
        %v933 = vsel %vm414, %v822, 0
        %v936 = vsel %vm414, %v823, 0
        %v939 = vsel %vm414, %v824, 0
        %v942 = vsel %vm414, %v825, 0
        %v945 = vsel %vm414, %v826, 0
        %v948 = vsel %vm414, %v827, 0
        %v951 = vsel %vm414, %v828, 0
        %v954 = vsel %vm414, %v829, 0
        %v957 = vsel %vm414, %v830, 0
        %v960 = vsel %vm414, %v831, 0
        %962 = vmatprep.subr.mxu0 0.0
        %963 = vmatpush1.msra.mxu0 %v865
        %964 = vmatprep.subr.mxu0 0.0
        %965 = vmatpush1.msra.mxu0 0.0
        %966 = vmatprep.subr.mxu0 0.0
        %967 = vmatpush1.msra.mxu0 0.0
        %968 = vmatprep.subr.mxu0 0.0
        %969 = vmatpush1.msra.mxu0 0.0
        %970 = vmatprep.subr.mxu0 0.0
        %971 = vmatpush1.msra.mxu0 0.0
        %972 = vmatprep.subr.mxu0 0.0
        %973 = vmatpush1.msra.mxu0 0.0
        %974 = vmatprep.subr.mxu0 0.0
        %975 = vmatpush1.msra.mxu0 0.0
        %976 = vmatprep.subr.mxu0 0.0
        %977 = vmatpush1.msra.mxu0 0.0
        %978 = vmatprep.subr.mxu0 0.0
        %979 = vmatpush1.msra.mxu0 0.0
        %980 = vmatprep.subr.mxu0 0.0
        %981 = vmatpush1.msra.mxu0 0.0
        %982 = vmatprep.subr.mxu0 0.0
        %983 = vmatpush1.msra.mxu0 0.0
        %984 = vmatprep.subr.mxu0 0.0
        %985 = vmatpush1.msra.mxu0 0.0
        %986 = vmatprep.subr.mxu0 0.0
        %987 = vmatpush1.msra.mxu0 0.0
        %988 = vmatprep.subr.mxu0 0.0
        %989 = vmatpush1.msra.mxu0 0.0
        %990 = vmatprep.subr.mxu0 0.0
        %991 = vmatpush1.msra.mxu0 0.0
        %992 = vmatprep.subr.mxu0 0.0
        %993 = vmatpush1.msra.mxu0 0.0
        %994 = vmatprep.subr.mxu0 0.0
        %995 = vmatpush1.msra.mxu0 0.0
        %996 = vmatprep.subr.mxu0 0.0
        %997 = vmatpush1.msra.mxu0 0.0
        %998 = vmatprep.subr.mxu0 0.0
        %999 = vmatpush1.msra.mxu0 0.0
        %1000 = vmatprep.subr.mxu0 0.0
        %1001 = vmatpush1.msra.mxu0 0.0
        %1002 = vmatprep.subr.mxu0 0.0
        %1003 = vmatpush1.msra.mxu0 0.0
        %1004 = vmatprep.subr.mxu0 0.0
        %1005 = vmatpush1.msra.mxu0 0.0
        %1006 = vmatprep.subr.mxu0 0.0
        %1007 = vmatpush1.msra.mxu0 0.0
        %1008 = vmatprep.subr.mxu0 0.0
        %1009 = vmatpush1.msra.mxu0 0.0
        %1010 = vmatprep.subr.mxu0 0.0
        %1011 = vmatpush1.msra.mxu0 0.0
        %1012 = vmatprep.subr.mxu0 0.0
        %1013 = vmatpush1.msra.mxu0 0.0
        %1014 = vmatprep.subr.mxu0 0.0
        %1015 = vmatpush1.msra.mxu0 0.0
        %1016 = vmatprep.subr.mxu0 0.0
        %1017 = vmatpush1.msra.mxu0 0.0
        %1018 = vmatprep.subr.mxu0 0.0
        %1019 = vmatpush1.msra.mxu0 0.0
        %1020 = vmatprep.subr.mxu0 0.0
        %1021 = vmatpush1.msra.mxu0 0.0
        %1022 = vmatprep.subr.mxu0 0.0
        %1023 = vmatpush1.msra.mxu0 0.0
        %1024 = vmatprep.subr.mxu0 0.0
        %1025 = vmatpush1.msra.mxu0 0.0
        %1026 = vmatprep.mubr.f32.mxu0 0.0
        %1027 = vmatmul.mubr.f32.gmra.mrb[0].mxu0 %v867
        %v1028 = vpop.f32.mrb[0].mxu0
        %v1029 = vadd.f32 0.0, %v1028
        %v1030 = vpop.f32.mrb[0].mxu0
        %1031 = vmatprep.mubr.f32.mxu0 0.0
        %1032 = vmatmul.mubr.f32.gmra.mrb[0].mxu0 %v870
        %v1033 = vpop.f32.mrb[0].mxu0
        %v1034 = vadd.f32 0.0, %v1033
        %v1035 = vpop.f32.mrb[0].mxu0
        %1036 = vmatprep.mubr.f32.mxu0 0.0
        %1037 = vmatmul.mubr.f32.gmra.mrb[0].mxu0 %v873
        %v1038 = vpop.f32.mrb[0].mxu0
        %v1039 = vadd.f32 0.0, %v1038
        %v1040 = vpop.f32.mrb[0].mxu0
        %1041 = vmatprep.mubr.f32.mxu0 0.0
        %1042 = vmatmul.mubr.f32.gmra.mrb[0].mxu0 %v876
        %v1043 = vpop.f32.mrb[0].mxu0
        %v1044 = vadd.f32 0.0, %v1043
        %v1045 = vpop.f32.mrb[0].mxu0
        %1046 = vmatprep.mubr.f32.mxu0 0.0
        %1047 = vmatmul.mubr.f32.gmra.mrb[0].mxu0 %v879
        %v1048 = vpop.f32.mrb[0].mxu0
        %v1049 = vadd.f32 0.0, %v1048
        %v1050 = vpop.f32.mrb[0].mxu0
        %1051 = vmatprep.mubr.f32.mxu0 0.0
        %1052 = vmatmul.mubr.f32.gmra.mrb[0].mxu0 %v882
        %v1053 = vpop.f32.mrb[0].mxu0
        %v1054 = vadd.f32 0.0, %v1053
        %v1055 = vpop.f32.mrb[0].mxu0
        %1056 = vmatprep.mubr.f32.mxu0 0.0
        %1057 = vmatmul.mubr.f32.gmra.mrb[0].mxu0 %v885
        %v1058 = vpop.f32.mrb[0].mxu0
        %v1059 = vadd.f32 0.0, %v1058
        %v1060 = vpop.f32.mrb[0].mxu0
        %1061 = vmatprep.mubr.f32.mxu0 0.0
        %1062 = vmatmul.mubr.f32.gmra.mrb[0].mxu0 %v888
        %v1063 = vpop.f32.mrb[0].mxu0
        %v1064 = vadd.f32 0.0, %v1063
        %v1065 = vpop.f32.mrb[0].mxu0
        %1066 = vmatprep.mubr.f32.mxu0 0.0
        %1067 = vmatmul.mubr.f32.gmra.mrb[0].mxu0 %v891
        %v1068 = vpop.f32.mrb[0].mxu0
        %v1069 = vadd.f32 0.0, %v1068
        %v1070 = vpop.f32.mrb[0].mxu0
        %1071 = vmatprep.mubr.f32.mxu0 0.0
        %1072 = vmatmul.mubr.f32.gmra.mrb[0].mxu0 %v894
        %v1073 = vpop.f32.mrb[0].mxu0
        %v1074 = vadd.f32 0.0, %v1073
        %v1075 = vpop.f32.mrb[0].mxu0
        %1076 = vmatprep.mubr.f32.mxu0 0.0
        %1077 = vmatmul.mubr.f32.gmra.mrb[0].mxu0 %v897
        %v1078 = vpop.f32.mrb[0].mxu0
        %v1079 = vadd.f32 0.0, %v1078
        %v1080 = vpop.f32.mrb[0].mxu0
        %1081 = vmatprep.mubr.f32.mxu0 0.0
        %1082 = vmatmul.mubr.f32.gmra.mrb[0].mxu0 %v900
        %v1083 = vpop.f32.mrb[0].mxu0
        %v1084 = vadd.f32 0.0, %v1083
        %v1085 = vpop.f32.mrb[0].mxu0
        %1086 = vmatprep.mubr.f32.mxu0 0.0
        %1087 = vmatmul.mubr.f32.gmra.mrb[0].mxu0 %v903
        %v1088 = vpop.f32.mrb[0].mxu0
        %v1089 = vadd.f32 0.0, %v1088
        %v1090 = vpop.f32.mrb[0].mxu0
        %1091 = vmatprep.mubr.f32.mxu0 0.0
        %1092 = vmatmul.mubr.f32.gmra.mrb[0].mxu0 %v906
        %v1093 = vpop.f32.mrb[0].mxu0
        %v1094 = vadd.f32 0.0, %v1093
        %v1095 = vpop.f32.mrb[0].mxu0
        %1096 = vmatprep.mubr.f32.mxu0 0.0
        %1097 = vmatmul.mubr.f32.gmra.mrb[0].mxu0 %v909
        %v1098 = vpop.f32.mrb[0].mxu0
        %v1099 = vadd.f32 0.0, %v1098
        %v1100 = vpop.f32.mrb[0].mxu0
        %1101 = vmatprep.mubr.f32.mxu0 0.0
        %1102 = vmatmul.mubr.f32.gmra.mrb[0].mxu0 %v912
        %v1103 = vpop.f32.mrb[0].mxu0
        %v1104 = vadd.f32 0.0, %v1103
        %v1105 = vpop.f32.mrb[0].mxu0
        %1106 = vmatprep.mubr.f32.mxu0 0.0
        %1107 = vmatmul.mubr.f32.gmra.mrb[0].mxu0 %v915
        %v1108 = vpop.f32.mrb[0].mxu0
        %v1109 = vadd.f32 0.0, %v1108
        %v1110 = vpop.f32.mrb[0].mxu0
        %1111 = vmatprep.mubr.f32.mxu0 0.0
        %1112 = vmatmul.mubr.f32.gmra.mrb[0].mxu0 %v918
        %v1113 = vpop.f32.mrb[0].mxu0
        %v1114 = vadd.f32 0.0, %v1113
        %v1115 = vpop.f32.mrb[0].mxu0
        %1116 = vmatprep.mubr.f32.mxu0 0.0
        %1117 = vmatmul.mubr.f32.gmra.mrb[0].mxu0 %v921
        %v1118 = vpop.f32.mrb[0].mxu0
        %v1119 = vadd.f32 0.0, %v1118
        %v1120 = vpop.f32.mrb[0].mxu0
        %1121 = vmatprep.mubr.f32.mxu0 0.0
        %1122 = vmatmul.mubr.f32.gmra.mrb[0].mxu0 %v924
        %v1123 = vpop.f32.mrb[0].mxu0
        %v1124 = vadd.f32 0.0, %v1123
        %v1125 = vpop.f32.mrb[0].mxu0
        %1126 = vmatprep.mubr.f32.mxu0 0.0
        %1127 = vmatmul.mubr.f32.gmra.mrb[0].mxu0 %v927
        %v1128 = vpop.f32.mrb[0].mxu0
        %v1129 = vadd.f32 0.0, %v1128
        %v1130 = vpop.f32.mrb[0].mxu0
        %1131 = vmatprep.mubr.f32.mxu0 0.0
        %1132 = vmatmul.mubr.f32.gmra.mrb[0].mxu0 %v930
        %v1133 = vpop.f32.mrb[0].mxu0
        %v1134 = vadd.f32 0.0, %v1133
        %v1135 = vpop.f32.mrb[0].mxu0
        %1136 = vmatprep.mubr.f32.mxu0 0.0
        %1137 = vmatmul.mubr.f32.gmra.mrb[0].mxu0 %v933
        %v1138 = vpop.f32.mrb[0].mxu0
        %v1139 = vadd.f32 0.0, %v1138
        %v1140 = vpop.f32.mrb[0].mxu0
        %1141 = vmatprep.mubr.f32.mxu0 0.0
        %1142 = vmatmul.mubr.f32.gmra.mrb[0].mxu0 %v936
        %v1143 = vpop.f32.mrb[0].mxu0
        %v1144 = vadd.f32 0.0, %v1143
        %v1145 = vpop.f32.mrb[0].mxu0
        %1146 = vmatprep.mubr.f32.mxu0 0.0
        %1147 = vmatmul.mubr.f32.gmra.mrb[0].mxu0 %v939
        %v1148 = vpop.f32.mrb[0].mxu0
        %v1149 = vadd.f32 0.0, %v1148
        %v1150 = vpop.f32.mrb[0].mxu0
        %1151 = vmatprep.mubr.f32.mxu0 0.0
        %1152 = vmatmul.mubr.f32.gmra.mrb[0].mxu0 %v942
        %v1153 = vpop.f32.mrb[0].mxu0
        %v1154 = vadd.f32 0.0, %v1153
        %v1155 = vpop.f32.mrb[0].mxu0
        %1156 = vmatprep.mubr.f32.mxu0 0.0
        %1157 = vmatmul.mubr.f32.gmra.mrb[0].mxu0 %v945
        %v1158 = vpop.f32.mrb[0].mxu0
        %v1159 = vadd.f32 0.0, %v1158
        %v1160 = vpop.f32.mrb[0].mxu0
        %1161 = vmatprep.mubr.f32.mxu0 0.0
        %1162 = vmatmul.mubr.f32.gmra.mrb[0].mxu0 %v948
        %v1163 = vpop.f32.mrb[0].mxu0
        %v1164 = vadd.f32 0.0, %v1163
        %v1165 = vpop.f32.mrb[0].mxu0
        %1166 = vmatprep.mubr.f32.mxu0 0.0
        %1167 = vmatmul.mubr.f32.gmra.mrb[0].mxu0 %v951
        %v1168 = vpop.f32.mrb[0].mxu0
        %v1169 = vadd.f32 0.0, %v1168
        %v1170 = vpop.f32.mrb[0].mxu0
        %1171 = vmatprep.mubr.f32.mxu0 0.0
        %1172 = vmatmul.mubr.f32.gmra.mrb[0].mxu0 %v954
        %v1173 = vpop.f32.mrb[0].mxu0
        %v1174 = vadd.f32 0.0, %v1173
        %v1175 = vpop.f32.mrb[0].mxu0
        %1176 = vmatprep.mubr.f32.mxu0 0.0
        %1177 = vmatmul.mubr.f32.gmra.mrb[0].mxu0 %v957
        %v1178 = vpop.f32.mrb[0].mxu0
        %v1179 = vadd.f32 0.0, %v1178
        %v1180 = vpop.f32.mrb[0].mxu0
        %1181 = vmatprep.mubr.f32.mxu0 0.0
        %1182 = vmatmul.mubr.f32.gmra.mrb[0].mxu0 %v960
        %v1183 = vpop.f32.mrb[0].mxu0
        %v1184 = vadd.f32 0.0, %v1183
        %v1185 = vpop.f32.mrb[0].mxu0
        %1186 = vdwg.mxu0
        %v1187 = vadd.f32 %v832, %v1029
        %v1188 = vadd.f32 %v833, %v1034
        %v1189 = vadd.f32 %v834, %v1039
        %v1190 = vadd.f32 %v835, %v1044
        %v1191 = vadd.f32 %v836, %v1049
        %v1192 = vadd.f32 %v837, %v1054
        %v1193 = vadd.f32 %v838, %v1059
        %v1194 = vadd.f32 %v839, %v1064
        %v1195 = vadd.f32 %v840, %v1069
        %v1196 = vadd.f32 %v841, %v1074
        %v1197 = vadd.f32 %v842, %v1079
        %v1198 = vadd.f32 %v843, %v1084
        %v1199 = vadd.f32 %v844, %v1089
        %v1200 = vadd.f32 %v845, %v1094
        %v1201 = vadd.f32 %v846, %v1099
        %v1202 = vadd.f32 %v847, %v1104
        %v1203 = vadd.f32 %v848, %v1109
        %v1204 = vadd.f32 %v849, %v1114
        %v1205 = vadd.f32 %v850, %v1119
        %v1206 = vadd.f32 %v851, %v1124
        %v1207 = vadd.f32 %v852, %v1129
        %v1208 = vadd.f32 %v853, %v1134
        %v1209 = vadd.f32 %v854, %v1139
        %v1210 = vadd.f32 %v855, %v1144
        %v1211 = vadd.f32 %v856, %v1149
        %v1212 = vadd.f32 %v857, %v1154
        %v1213 = vadd.f32 %v858, %v1159
        %v1214 = vadd.f32 %v859, %v1164
        %v1215 = vadd.f32 %v860, %v1169
        %v1216 = vadd.f32 %v861, %v1174
        %v1217 = vadd.f32 %v862, %v1179
        %v1218 = vadd.f32 %v863, %v1184
        %1219 = vst [vmem:[#allocation2] sm:$0xff] %v1187
        %1220 = vst [vmem:[#allocation2 + $0x8] sm:$0xff] %v1188
        %1221 = vst [vmem:[#allocation2 + $0x10] sm:$0xff] %v1189
        %1222 = vst [vmem:[#allocation2 + $0x18] sm:$0xff] %v1190
        %1223 = vst [vmem:[#allocation2 + $0x20] sm:$0xff] %v1191
        %1224 = vst [vmem:[#allocation2 + $0x28] sm:$0xff] %v1192
        %1225 = vst [vmem:[#allocation2 + $0x30] sm:$0xff] %v1193
        %1226 = vst [vmem:[#allocation2 + $0x38] sm:$0xff] %v1194
        %1227 = vst [vmem:[#allocation2 + $0x40] sm:$0xff] %v1195
        %1228 = vst [vmem:[#allocation2 + $0x48] sm:$0xff] %v1196
        %1229 = vst [vmem:[#allocation2 + $0x50] sm:$0xff] %v1197
        %1230 = vst [vmem:[#allocation2 + $0x58] sm:$0xff] %v1198
        %1231 = vst [vmem:[#allocation2 + $0x60] sm:$0xff] %v1199
        %1232 = vst [vmem:[#allocation2 + $0x68] sm:$0xff] %v1200
        %1233 = vst [vmem:[#allocation2 + $0x70] sm:$0xff] %v1201
        %1234 = vst [vmem:[#allocation2 + $0x78] sm:$0xff] %v1202
        %1235 = vst [vmem:[#allocation2 + $0x80] sm:$0xff] %v1203
        %1236 = vst [vmem:[#allocation2 + $0x88] sm:$0xff] %v1204
        %1237 = vst [vmem:[#allocation2 + $0x90] sm:$0xff] %v1205
        %1238 = vst [vmem:[#allocation2 + $0x98] sm:$0xff] %v1206
        %1239 = vst [vmem:[#allocation2 + $0xa0] sm:$0xff] %v1207
        %1240 = vst [vmem:[#allocation2 + $0xa8] sm:$0xff] %v1208
        %1241 = vst [vmem:[#allocation2 + $0xb0] sm:$0xff] %v1209
        %1242 = vst [vmem:[#allocation2 + $0xb8] sm:$0xff] %v1210
        %1243 = vst [vmem:[#allocation2 + $0xc0] sm:$0xff] %v1211
        %1244 = vst [vmem:[#allocation2 + $0xc8] sm:$0xff] %v1212
        %1245 = vst [vmem:[#allocation2 + $0xd0] sm:$0xff] %v1213
        %1246 = vst [vmem:[#allocation2 + $0xd8] sm:$0xff] %v1214
        %1247 = vst [vmem:[#allocation2 + $0xe0] sm:$0xff] %v1215
        %1248 = vst [vmem:[#allocation2 + $0xe8] sm:$0xff] %v1216
        %1249 = vst [vmem:[#allocation2 + $0xf0] sm:$0xff] %v1217
        %1250 = vst [vmem:[#allocation2 + $0xf8] sm:$0xff] %v1218
        %v1251 = vld [vmem:[%s348 + $0x2] sm:$0xff]
        %v1252 = vld [vmem:[%s348 + $0xa] sm:$0xff]
        %v1253 = vld [vmem:[%s348 + $0x1a] sm:$0xff]
        %v1254 = vld [vmem:[%s348 + $0x22] sm:$0xff]
        %v1255 = vld [vmem:[%s348 + $0x32] sm:$0xff]
        %v1256 = vld [vmem:[%s348 + $0x3a] sm:$0xff]
        %v1257 = vld [vmem:[%s348 + $0x4a] sm:$0xff]
        %v1258 = vld [vmem:[%s348 + $0x52] sm:$0xff]
        %v1259 = vld [vmem:[%s348 + $0x62] sm:$0xff]
        %v1260 = vld [vmem:[%s348 + $0x6a] sm:$0xff]
        %v1261 = vld [vmem:[%s348 + $0x7a] sm:$0xff]
        %v1262 = vld [vmem:[%s348 + $0x82] sm:$0xff]
        %v1263 = vld [vmem:[%s348 + $0x92] sm:$0xff]
        %v1264 = vld [vmem:[%s348 + $0x9a] sm:$0xff]
        %v1265 = vld [vmem:[%s348 + $0xaa] sm:$0xff]
        %v1266 = vld [vmem:[%s348 + $0xb2] sm:$0xff]
        %v1267 = vld [vmem:[%s348 + $0xc2] sm:$0xff]
        %v1268 = vld [vmem:[%s348 + $0xca] sm:$0xff]
        %v1269 = vld [vmem:[%s348 + $0xda] sm:$0xff]
        %v1270 = vld [vmem:[%s348 + $0xe2] sm:$0xff]
        %v1271 = vld [vmem:[%s348 + $0xf2] sm:$0xff]
        %v1272 = vld [vmem:[%s348 + $0xfa] sm:$0xff]
        %v1273 = vld [vmem:[%s348 + $0x10a] sm:$0xff]
        %v1274 = vld [vmem:[%s348 + $0x112] sm:$0xff]
        %v1275 = vld [vmem:[%s348 + $0x122] sm:$0xff]
        %v1276 = vld [vmem:[%s348 + $0x12a] sm:$0xff]
        %v1277 = vld [vmem:[%s348 + $0x13a] sm:$0xff]
        %v1278 = vld [vmem:[%s348 + $0x142] sm:$0xff]
        %v1279 = vld [vmem:[%s348 + $0x152] sm:$0xff]
        %v1280 = vld [vmem:[%s348 + $0x15a] sm:$0xff]
        %v1281 = vld [vmem:[%s348 + $0x16a] sm:$0xff]
        %v1282 = vld [vmem:[%s348 + $0x172] sm:$0xff]
        %v1283 = vld [vmem:[#allocation2] sm:$0xff]
        %v1284 = vld [vmem:[#allocation2 + $0x8] sm:$0xff]
        %v1285 = vld [vmem:[#allocation2 + $0x10] sm:$0xff]
        %v1286 = vld [vmem:[#allocation2 + $0x18] sm:$0xff]
        %v1287 = vld [vmem:[#allocation2 + $0x20] sm:$0xff]
        %v1288 = vld [vmem:[#allocation2 + $0x28] sm:$0xff]
        %v1289 = vld [vmem:[#allocation2 + $0x30] sm:$0xff]
        %v1290 = vld [vmem:[#allocation2 + $0x38] sm:$0xff]
        %v1291 = vld [vmem:[#allocation2 + $0x40] sm:$0xff]
        %v1292 = vld [vmem:[#allocation2 + $0x48] sm:$0xff]
        %v1293 = vld [vmem:[#allocation2 + $0x50] sm:$0xff]
        %v1294 = vld [vmem:[#allocation2 + $0x58] sm:$0xff]
        %v1295 = vld [vmem:[#allocation2 + $0x60] sm:$0xff]
        %v1296 = vld [vmem:[#allocation2 + $0x68] sm:$0xff]
        %v1297 = vld [vmem:[#allocation2 + $0x70] sm:$0xff]
        %v1298 = vld [vmem:[#allocation2 + $0x78] sm:$0xff]
        %v1299 = vld [vmem:[#allocation2 + $0x80] sm:$0xff]
        %v1300 = vld [vmem:[#allocation2 + $0x88] sm:$0xff]
        %v1301 = vld [vmem:[#allocation2 + $0x90] sm:$0xff]
        %v1302 = vld [vmem:[#allocation2 + $0x98] sm:$0xff]
        %v1303 = vld [vmem:[#allocation2 + $0xa0] sm:$0xff]
        %v1304 = vld [vmem:[#allocation2 + $0xa8] sm:$0xff]
        %v1305 = vld [vmem:[#allocation2 + $0xb0] sm:$0xff]
        %v1306 = vld [vmem:[#allocation2 + $0xb8] sm:$0xff]
        %v1307 = vld [vmem:[#allocation2 + $0xc0] sm:$0xff]
        %v1308 = vld [vmem:[#allocation2 + $0xc8] sm:$0xff]
        %v1309 = vld [vmem:[#allocation2 + $0xd0] sm:$0xff]
        %v1310 = vld [vmem:[#allocation2 + $0xd8] sm:$0xff]
        %v1311 = vld [vmem:[#allocation2 + $0xe0] sm:$0xff]
        %v1312 = vld [vmem:[#allocation2 + $0xe8] sm:$0xff]
        %v1313 = vld [vmem:[#allocation2 + $0xf0] sm:$0xff]
        %v1314 = vld [vmem:[#allocation2 + $0xf8] sm:$0xff]
        %s1315 = scalar_lea.vmem %s266, 16 [#allocation3]
        %v1316 = vld [vmem:[%s1315] sm:$0xff]
        %v1318 = vsel %vm414, %v1251, 0
        %v1321 = vsel %vm414, %v1252, 0
        %v1324 = vsel %vm414, %v1253, 0
        %v1327 = vsel %vm414, %v1254, 0
        %v1330 = vsel %vm414, %v1255, 0
        %v1333 = vsel %vm414, %v1256, 0
        %v1336 = vsel %vm414, %v1257, 0
        %v1339 = vsel %vm414, %v1258, 0
        %v1342 = vsel %vm414, %v1259, 0
        %v1345 = vsel %vm414, %v1260, 0
        %v1348 = vsel %vm414, %v1261, 0
        %v1351 = vsel %vm414, %v1262, 0
        %v1354 = vsel %vm414, %v1263, 0
        %v1357 = vsel %vm414, %v1264, 0
        %v1360 = vsel %vm414, %v1265, 0
        %v1363 = vsel %vm414, %v1266, 0
        %v1366 = vsel %vm414, %v1267, 0
        %v1369 = vsel %vm414, %v1268, 0
        %v1372 = vsel %vm414, %v1269, 0
        %v1375 = vsel %vm414, %v1270, 0
        %v1378 = vsel %vm414, %v1271, 0
        %v1381 = vsel %vm414, %v1272, 0
        %v1384 = vsel %vm414, %v1273, 0
        %v1387 = vsel %vm414, %v1274, 0
        %v1390 = vsel %vm414, %v1275, 0
        %v1393 = vsel %vm414, %v1276, 0
        %v1396 = vsel %vm414, %v1277, 0
        %v1399 = vsel %vm414, %v1278, 0
        %v1402 = vsel %vm414, %v1279, 0
        %v1405 = vsel %vm414, %v1280, 0
        %v1408 = vsel %vm414, %v1281, 0
        %v1411 = vsel %vm414, %v1282, 0
        %1413 = vmatprep.subr.mxu0 0.0
        %1414 = vmatpush1.msra.mxu0 %v1316
        %1415 = vmatprep.subr.mxu0 0.0
        %1416 = vmatpush1.msra.mxu0 0.0
        %1417 = vmatprep.subr.mxu0 0.0
        %1418 = vmatpush1.msra.mxu0 0.0
        %1419 = vmatprep.subr.mxu0 0.0
        %1420 = vmatpush1.msra.mxu0 0.0
        %1421 = vmatprep.subr.mxu0 0.0
        %1422 = vmatpush1.msra.mxu0 0.0
        %1423 = vmatprep.subr.mxu0 0.0
        %1424 = vmatpush1.msra.mxu0 0.0
        %1425 = vmatprep.subr.mxu0 0.0
        %1426 = vmatpush1.msra.mxu0 0.0
        %1427 = vmatprep.subr.mxu0 0.0
        %1428 = vmatpush1.msra.mxu0 0.0
        %1429 = vmatprep.subr.mxu0 0.0
        %1430 = vmatpush1.msra.mxu0 0.0
        %1431 = vmatprep.subr.mxu0 0.0
        %1432 = vmatpush1.msra.mxu0 0.0
        %1433 = vmatprep.subr.mxu0 0.0
        %1434 = vmatpush1.msra.mxu0 0.0
        %1435 = vmatprep.subr.mxu0 0.0
        %1436 = vmatpush1.msra.mxu0 0.0
        %1437 = vmatprep.subr.mxu0 0.0
        %1438 = vmatpush1.msra.mxu0 0.0
        %1439 = vmatprep.subr.mxu0 0.0
        %1440 = vmatpush1.msra.mxu0 0.0
        %1441 = vmatprep.subr.mxu0 0.0
        %1442 = vmatpush1.msra.mxu0 0.0
        %1443 = vmatprep.subr.mxu0 0.0
        %1444 = vmatpush1.msra.mxu0 0.0
        %1445 = vmatprep.subr.mxu0 0.0
        %1446 = vmatpush1.msra.mxu0 0.0
        %1447 = vmatprep.subr.mxu0 0.0
        %1448 = vmatpush1.msra.mxu0 0.0
        %1449 = vmatprep.subr.mxu0 0.0
        %1450 = vmatpush1.msra.mxu0 0.0
        %1451 = vmatprep.subr.mxu0 0.0
        %1452 = vmatpush1.msra.mxu0 0.0
        %1453 = vmatprep.subr.mxu0 0.0
        %1454 = vmatpush1.msra.mxu0 0.0
        %1455 = vmatprep.subr.mxu0 0.0
        %1456 = vmatpush1.msra.mxu0 0.0
        %1457 = vmatprep.subr.mxu0 0.0
        %1458 = vmatpush1.msra.mxu0 0.0
        %1459 = vmatprep.subr.mxu0 0.0
        %1460 = vmatpush1.msra.mxu0 0.0
        %1461 = vmatprep.subr.mxu0 0.0
        %1462 = vmatpush1.msra.mxu0 0.0
        %1463 = vmatprep.subr.mxu0 0.0
        %1464 = vmatpush1.msra.mxu0 0.0
        %1465 = vmatprep.subr.mxu0 0.0
        %1466 = vmatpush1.msra.mxu0 0.0
        %1467 = vmatprep.subr.mxu0 0.0
        %1468 = vmatpush1.msra.mxu0 0.0
        %1469 = vmatprep.subr.mxu0 0.0
        %1470 = vmatpush1.msra.mxu0 0.0
        %1471 = vmatprep.subr.mxu0 0.0
        %1472 = vmatpush1.msra.mxu0 0.0
        %1473 = vmatprep.subr.mxu0 0.0
        %1474 = vmatpush1.msra.mxu0 0.0
        %1475 = vmatprep.subr.mxu0 0.0
        %1476 = vmatpush1.msra.mxu0 0.0
        %1477 = vmatprep.mubr.f32.mxu0 0.0
        %1478 = vmatmul.mubr.f32.gmra.mrb[0].mxu0 %v1318
        %v1479 = vpop.f32.mrb[0].mxu0
        %v1480 = vadd.f32 0.0, %v1479
        %v1481 = vpop.f32.mrb[0].mxu0
        %1482 = vmatprep.mubr.f32.mxu0 0.0
        %1483 = vmatmul.mubr.f32.gmra.mrb[0].mxu0 %v1321
        %v1484 = vpop.f32.mrb[0].mxu0
        %v1485 = vadd.f32 0.0, %v1484
        %v1486 = vpop.f32.mrb[0].mxu0
        %1487 = vmatprep.mubr.f32.mxu0 0.0
        %1488 = vmatmul.mubr.f32.gmra.mrb[0].mxu0 %v1324
        %v1489 = vpop.f32.mrb[0].mxu0
        %v1490 = vadd.f32 0.0, %v1489
        %v1491 = vpop.f32.mrb[0].mxu0
        %1492 = vmatprep.mubr.f32.mxu0 0.0
        %1493 = vmatmul.mubr.f32.gmra.mrb[0].mxu0 %v1327
        %v1494 = vpop.f32.mrb[0].mxu0
        %v1495 = vadd.f32 0.0, %v1494
        %v1496 = vpop.f32.mrb[0].mxu0
        %1497 = vmatprep.mubr.f32.mxu0 0.0
        %1498 = vmatmul.mubr.f32.gmra.mrb[0].mxu0 %v1330
        %v1499 = vpop.f32.mrb[0].mxu0
        %v1500 = vadd.f32 0.0, %v1499
        %v1501 = vpop.f32.mrb[0].mxu0
        %1502 = vmatprep.mubr.f32.mxu0 0.0
        %1503 = vmatmul.mubr.f32.gmra.mrb[0].mxu0 %v1333
        %v1504 = vpop.f32.mrb[0].mxu0
        %v1505 = vadd.f32 0.0, %v1504
        %v1506 = vpop.f32.mrb[0].mxu0
        %1507 = vmatprep.mubr.f32.mxu0 0.0
        %1508 = vmatmul.mubr.f32.gmra.mrb[0].mxu0 %v1336
        %v1509 = vpop.f32.mrb[0].mxu0
        %v1510 = vadd.f32 0.0, %v1509
        %v1511 = vpop.f32.mrb[0].mxu0
        %1512 = vmatprep.mubr.f32.mxu0 0.0
        %1513 = vmatmul.mubr.f32.gmra.mrb[0].mxu0 %v1339
        %v1514 = vpop.f32.mrb[0].mxu0
        %v1515 = vadd.f32 0.0, %v1514
        %v1516 = vpop.f32.mrb[0].mxu0
        %1517 = vmatprep.mubr.f32.mxu0 0.0
        %1518 = vmatmul.mubr.f32.gmra.mrb[0].mxu0 %v1342
        %v1519 = vpop.f32.mrb[0].mxu0
        %v1520 = vadd.f32 0.0, %v1519
        %v1521 = vpop.f32.mrb[0].mxu0
        %1522 = vmatprep.mubr.f32.mxu0 0.0
        %1523 = vmatmul.mubr.f32.gmra.mrb[0].mxu0 %v1345
        %v1524 = vpop.f32.mrb[0].mxu0
        %v1525 = vadd.f32 0.0, %v1524
        %v1526 = vpop.f32.mrb[0].mxu0
        %1527 = vmatprep.mubr.f32.mxu0 0.0
        %1528 = vmatmul.mubr.f32.gmra.mrb[0].mxu0 %v1348
        %v1529 = vpop.f32.mrb[0].mxu0
        %v1530 = vadd.f32 0.0, %v1529
        %v1531 = vpop.f32.mrb[0].mxu0
        %1532 = vmatprep.mubr.f32.mxu0 0.0
        %1533 = vmatmul.mubr.f32.gmra.mrb[0].mxu0 %v1351
        %v1534 = vpop.f32.mrb[0].mxu0
        %v1535 = vadd.f32 0.0, %v1534
        %v1536 = vpop.f32.mrb[0].mxu0
        %1537 = vmatprep.mubr.f32.mxu0 0.0
        %1538 = vmatmul.mubr.f32.gmra.mrb[0].mxu0 %v1354
        %v1539 = vpop.f32.mrb[0].mxu0
        %v1540 = vadd.f32 0.0, %v1539
        %v1541 = vpop.f32.mrb[0].mxu0
        %1542 = vmatprep.mubr.f32.mxu0 0.0
        %1543 = vmatmul.mubr.f32.gmra.mrb[0].mxu0 %v1357
        %v1544 = vpop.f32.mrb[0].mxu0
        %v1545 = vadd.f32 0.0, %v1544
        %v1546 = vpop.f32.mrb[0].mxu0
        %1547 = vmatprep.mubr.f32.mxu0 0.0
        %1548 = vmatmul.mubr.f32.gmra.mrb[0].mxu0 %v1360
        %v1549 = vpop.f32.mrb[0].mxu0
        %v1550 = vadd.f32 0.0, %v1549
        %v1551 = vpop.f32.mrb[0].mxu0
        %1552 = vmatprep.mubr.f32.mxu0 0.0
        %1553 = vmatmul.mubr.f32.gmra.mrb[0].mxu0 %v1363
        %v1554 = vpop.f32.mrb[0].mxu0
        %v1555 = vadd.f32 0.0, %v1554
        %v1556 = vpop.f32.mrb[0].mxu0
        %1557 = vmatprep.mubr.f32.mxu0 0.0
        %1558 = vmatmul.mubr.f32.gmra.mrb[0].mxu0 %v1366
        %v1559 = vpop.f32.mrb[0].mxu0
        %v1560 = vadd.f32 0.0, %v1559
        %v1561 = vpop.f32.mrb[0].mxu0
        %1562 = vmatprep.mubr.f32.mxu0 0.0
        %1563 = vmatmul.mubr.f32.gmra.mrb[0].mxu0 %v1369
        %v1564 = vpop.f32.mrb[0].mxu0
        %v1565 = vadd.f32 0.0, %v1564
        %v1566 = vpop.f32.mrb[0].mxu0
        %1567 = vmatprep.mubr.f32.mxu0 0.0
        %1568 = vmatmul.mubr.f32.gmra.mrb[0].mxu0 %v1372
        %v1569 = vpop.f32.mrb[0].mxu0
        %v1570 = vadd.f32 0.0, %v1569
        %v1571 = vpop.f32.mrb[0].mxu0
        %1572 = vmatprep.mubr.f32.mxu0 0.0
        %1573 = vmatmul.mubr.f32.gmra.mrb[0].mxu0 %v1375
        %v1574 = vpop.f32.mrb[0].mxu0
        %v1575 = vadd.f32 0.0, %v1574
        %v1576 = vpop.f32.mrb[0].mxu0
        %1577 = vmatprep.mubr.f32.mxu0 0.0
        %1578 = vmatmul.mubr.f32.gmra.mrb[0].mxu0 %v1378
        %v1579 = vpop.f32.mrb[0].mxu0
        %v1580 = vadd.f32 0.0, %v1579
        %v1581 = vpop.f32.mrb[0].mxu0
        %1582 = vmatprep.mubr.f32.mxu0 0.0
        %1583 = vmatmul.mubr.f32.gmra.mrb[0].mxu0 %v1381
        %v1584 = vpop.f32.mrb[0].mxu0
        %v1585 = vadd.f32 0.0, %v1584
        %v1586 = vpop.f32.mrb[0].mxu0
        %1587 = vmatprep.mubr.f32.mxu0 0.0
        %1588 = vmatmul.mubr.f32.gmra.mrb[0].mxu0 %v1384
        %v1589 = vpop.f32.mrb[0].mxu0
        %v1590 = vadd.f32 0.0, %v1589
        %v1591 = vpop.f32.mrb[0].mxu0
        %1592 = vmatprep.mubr.f32.mxu0 0.0
        %1593 = vmatmul.mubr.f32.gmra.mrb[0].mxu0 %v1387
        %v1594 = vpop.f32.mrb[0].mxu0
        %v1595 = vadd.f32 0.0, %v1594
        %v1596 = vpop.f32.mrb[0].mxu0
        %1597 = vmatprep.mubr.f32.mxu0 0.0
        %1598 = vmatmul.mubr.f32.gmra.mrb[0].mxu0 %v1390
        %v1599 = vpop.f32.mrb[0].mxu0
        %v1600 = vadd.f32 0.0, %v1599
        %v1601 = vpop.f32.mrb[0].mxu0
        %1602 = vmatprep.mubr.f32.mxu0 0.0
        %1603 = vmatmul.mubr.f32.gmra.mrb[0].mxu0 %v1393
        %v1604 = vpop.f32.mrb[0].mxu0
        %v1605 = vadd.f32 0.0, %v1604
        %v1606 = vpop.f32.mrb[0].mxu0
        %1607 = vmatprep.mubr.f32.mxu0 0.0
        %1608 = vmatmul.mubr.f32.gmra.mrb[0].mxu0 %v1396
        %v1609 = vpop.f32.mrb[0].mxu0
        %v1610 = vadd.f32 0.0, %v1609
        %v1611 = vpop.f32.mrb[0].mxu0
        %1612 = vmatprep.mubr.f32.mxu0 0.0
        %1613 = vmatmul.mubr.f32.gmra.mrb[0].mxu0 %v1399
        %v1614 = vpop.f32.mrb[0].mxu0
        %v1615 = vadd.f32 0.0, %v1614
        %v1616 = vpop.f32.mrb[0].mxu0
        %1617 = vmatprep.mubr.f32.mxu0 0.0
        %1618 = vmatmul.mubr.f32.gmra.mrb[0].mxu0 %v1402
        %v1619 = vpop.f32.mrb[0].mxu0
        %v1620 = vadd.f32 0.0, %v1619
        %v1621 = vpop.f32.mrb[0].mxu0
        %1622 = vmatprep.mubr.f32.mxu0 0.0
        %1623 = vmatmul.mubr.f32.gmra.mrb[0].mxu0 %v1405
        %v1624 = vpop.f32.mrb[0].mxu0
        %v1625 = vadd.f32 0.0, %v1624
        %v1626 = vpop.f32.mrb[0].mxu0
        %1627 = vmatprep.mubr.f32.mxu0 0.0
        %1628 = vmatmul.mubr.f32.gmra.mrb[0].mxu0 %v1408
        %v1629 = vpop.f32.mrb[0].mxu0
        %v1630 = vadd.f32 0.0, %v1629
        %v1631 = vpop.f32.mrb[0].mxu0
        %1632 = vmatprep.mubr.f32.mxu0 0.0
        %1633 = vmatmul.mubr.f32.gmra.mrb[0].mxu0 %v1411
        %v1634 = vpop.f32.mrb[0].mxu0
        %v1635 = vadd.f32 0.0, %v1634
        %v1636 = vpop.f32.mrb[0].mxu0
        %1637 = vdwg.mxu0
        %v1638 = vadd.f32 %v1283, %v1480
        %v1639 = vadd.f32 %v1284, %v1485
        %v1640 = vadd.f32 %v1285, %v1490
        %v1641 = vadd.f32 %v1286, %v1495
        %v1642 = vadd.f32 %v1287, %v1500
        %v1643 = vadd.f32 %v1288, %v1505
        %v1644 = vadd.f32 %v1289, %v1510
        %v1645 = vadd.f32 %v1290, %v1515
        %v1646 = vadd.f32 %v1291, %v1520
        %v1647 = vadd.f32 %v1292, %v1525
        %v1648 = vadd.f32 %v1293, %v1530
        %v1649 = vadd.f32 %v1294, %v1535
        %v1650 = vadd.f32 %v1295, %v1540
        %v1651 = vadd.f32 %v1296, %v1545
        %v1652 = vadd.f32 %v1297, %v1550
        %v1653 = vadd.f32 %v1298, %v1555
        %v1654 = vadd.f32 %v1299, %v1560
        %v1655 = vadd.f32 %v1300, %v1565
        %v1656 = vadd.f32 %v1301, %v1570
        %v1657 = vadd.f32 %v1302, %v1575
        %v1658 = vadd.f32 %v1303, %v1580
        %v1659 = vadd.f32 %v1304, %v1585
        %v1660 = vadd.f32 %v1305, %v1590
        %v1661 = vadd.f32 %v1306, %v1595
        %v1662 = vadd.f32 %v1307, %v1600
        %v1663 = vadd.f32 %v1308, %v1605
        %v1664 = vadd.f32 %v1309, %v1610
        %v1665 = vadd.f32 %v1310, %v1615
        %v1666 = vadd.f32 %v1311, %v1620
        %v1667 = vadd.f32 %v1312, %v1625
        %v1668 = vadd.f32 %v1313, %v1630
        %v1669 = vadd.f32 %v1314, %v1635
        %1670 = vst [vmem:[#allocation2] sm:$0xff] %v1638
        %1671 = vst [vmem:[#allocation2 + $0x8] sm:$0xff] %v1639
        %1672 = vst [vmem:[#allocation2 + $0x10] sm:$0xff] %v1640
        %1673 = vst [vmem:[#allocation2 + $0x18] sm:$0xff] %v1641
        %1674 = vst [vmem:[#allocation2 + $0x20] sm:$0xff] %v1642
        %1675 = vst [vmem:[#allocation2 + $0x28] sm:$0xff] %v1643
        %1676 = vst [vmem:[#allocation2 + $0x30] sm:$0xff] %v1644
        %1677 = vst [vmem:[#allocation2 + $0x38] sm:$0xff] %v1645
        %1678 = vst [vmem:[#allocation2 + $0x40] sm:$0xff] %v1646
        %1679 = vst [vmem:[#allocation2 + $0x48] sm:$0xff] %v1647
        %1680 = vst [vmem:[#allocation2 + $0x50] sm:$0xff] %v1648
        %1681 = vst [vmem:[#allocation2 + $0x58] sm:$0xff] %v1649
        %1682 = vst [vmem:[#allocation2 + $0x60] sm:$0xff] %v1650
        %1683 = vst [vmem:[#allocation2 + $0x68] sm:$0xff] %v1651
        %1684 = vst [vmem:[#allocation2 + $0x70] sm:$0xff] %v1652
        %1685 = vst [vmem:[#allocation2 + $0x78] sm:$0xff] %v1653
        %1686 = vst [vmem:[#allocation2 + $0x80] sm:$0xff] %v1654
        %1687 = vst [vmem:[#allocation2 + $0x88] sm:$0xff] %v1655
        %1688 = vst [vmem:[#allocation2 + $0x90] sm:$0xff] %v1656
        %1689 = vst [vmem:[#allocation2 + $0x98] sm:$0xff] %v1657
        %1690 = vst [vmem:[#allocation2 + $0xa0] sm:$0xff] %v1658
        %1691 = vst [vmem:[#allocation2 + $0xa8] sm:$0xff] %v1659
        %1692 = vst [vmem:[#allocation2 + $0xb0] sm:$0xff] %v1660
        %1693 = vst [vmem:[#allocation2 + $0xb8] sm:$0xff] %v1661
        %1694 = vst [vmem:[#allocation2 + $0xc0] sm:$0xff] %v1662
        %1695 = vst [vmem:[#allocation2 + $0xc8] sm:$0xff] %v1663
        %1696 = vst [vmem:[#allocation2 + $0xd0] sm:$0xff] %v1664
        %1697 = vst [vmem:[#allocation2 + $0xd8] sm:$0xff] %v1665
        %1698 = vst [vmem:[#allocation2 + $0xe0] sm:$0xff] %v1666
        %1699 = vst [vmem:[#allocation2 + $0xe8] sm:$0xff] %v1667
        %1700 = vst [vmem:[#allocation2 + $0xf0] sm:$0xff] %v1668
        %1701 = vst [vmem:[#allocation2 + $0xf8] sm:$0xff] %v1669
        %p1702 = scmp.eq.s32.totalorder %s25, 2
        // Predicated region
        $region79: #{tpu_custom_call.1} parent=69 // pred_check
          %p1703 = pneg %p1702
        $region80: #{tpu_custom_call.1} parent=69 // pred_check_branch
          %1705 = sbr.rel (%p1703) target = $region82
        $region81: #{tpu_custom_call.1} parent=69 // pred_region
          %v1706 = vld [vmem:[#allocation2] sm:$0xff]
          %v1707 = vld [vmem:[#allocation2 + $0x8] sm:$0xff]
          %v1708 = vld [vmem:[#allocation2 + $0x10] sm:$0xff]
          %v1709 = vld [vmem:[#allocation2 + $0x18] sm:$0xff]
          %v1710 = vld [vmem:[#allocation2 + $0x20] sm:$0xff]
          %v1711 = vld [vmem:[#allocation2 + $0x28] sm:$0xff]
          %v1712 = vld [vmem:[#allocation2 + $0x30] sm:$0xff]
          %v1713 = vld [vmem:[#allocation2 + $0x38] sm:$0xff]
          %v1714 = vld [vmem:[#allocation2 + $0x40] sm:$0xff]
          %v1715 = vld [vmem:[#allocation2 + $0x48] sm:$0xff]
          %v1716 = vld [vmem:[#allocation2 + $0x50] sm:$0xff]
          %v1717 = vld [vmem:[#allocation2 + $0x58] sm:$0xff]
          %v1718 = vld [vmem:[#allocation2 + $0x60] sm:$0xff]
          %v1719 = vld [vmem:[#allocation2 + $0x68] sm:$0xff]
          %v1720 = vld [vmem:[#allocation2 + $0x70] sm:$0xff]
          %v1721 = vld [vmem:[#allocation2 + $0x78] sm:$0xff]
          %v1722 = vld [vmem:[#allocation2 + $0x80] sm:$0xff]
          %v1723 = vld [vmem:[#allocation2 + $0x88] sm:$0xff]
          %v1724 = vld [vmem:[#allocation2 + $0x90] sm:$0xff]
          %v1725 = vld [vmem:[#allocation2 + $0x98] sm:$0xff]
          %v1726 = vld [vmem:[#allocation2 + $0xa0] sm:$0xff]
          %v1727 = vld [vmem:[#allocation2 + $0xa8] sm:$0xff]
          %v1728 = vld [vmem:[#allocation2 + $0xb0] sm:$0xff]
          %v1729 = vld [vmem:[#allocation2 + $0xb8] sm:$0xff]
          %v1730 = vld [vmem:[#allocation2 + $0xc0] sm:$0xff]
          %v1731 = vld [vmem:[#allocation2 + $0xc8] sm:$0xff]
          %v1732 = vld [vmem:[#allocation2 + $0xd0] sm:$0xff]
          %v1733 = vld [vmem:[#allocation2 + $0xd8] sm:$0xff]
          %v1734 = vld [vmem:[#allocation2 + $0xe0] sm:$0xff]
          %v1735 = vld [vmem:[#allocation2 + $0xe8] sm:$0xff]
          %v1736 = vld [vmem:[#allocation2 + $0xf0] sm:$0xff]
          %v1737 = vld [vmem:[#allocation2 + $0xf8] sm:$0xff]
          %v1738 = vld [vmem:[%s307] sm:$0x1]
          %v1740 = vlaneseq
          %v1741 = vshrl.u32 %v1740, 7
          %v1742 = vsub.s32 0, %v1741
          %v1743 = vrot.slane %v1738, %v1742
          %v1745 = vmul.f32 %v1706, %v1743
          %v1746 = vmul.f32 %v1707, %v1743
          %v1747 = vmul.f32 %v1708, %v1743
          %v1748 = vmul.f32 %v1709, %v1743
          %v1749 = vmul.f32 %v1710, %v1743
          %v1750 = vmul.f32 %v1711, %v1743
          %v1751 = vmul.f32 %v1712, %v1743
          %v1752 = vmul.f32 %v1713, %v1743
          %v1753 = vmul.f32 %v1714, %v1743
          %v1754 = vmul.f32 %v1715, %v1743
          %v1755 = vmul.f32 %v1716, %v1743
          %v1756 = vmul.f32 %v1717, %v1743
          %v1757 = vmul.f32 %v1718, %v1743
          %v1758 = vmul.f32 %v1719, %v1743
          %v1759 = vmul.f32 %v1720, %v1743
          %v1760 = vmul.f32 %v1721, %v1743
          %v1761 = vmul.f32 %v1722, %v1743
          %v1762 = vmul.f32 %v1723, %v1743
          %v1763 = vmul.f32 %v1724, %v1743
          %v1764 = vmul.f32 %v1725, %v1743
          %v1765 = vmul.f32 %v1726, %v1743
          %v1766 = vmul.f32 %v1727, %v1743
          %v1767 = vmul.f32 %v1728, %v1743
          %v1768 = vmul.f32 %v1729, %v1743
          %v1769 = vmul.f32 %v1730, %v1743
          %v1770 = vmul.f32 %v1731, %v1743
          %v1771 = vmul.f32 %v1732, %v1743
          %v1772 = vmul.f32 %v1733, %v1743
          %v1773 = vmul.f32 %v1734, %v1743
          %v1774 = vmul.f32 %v1735, %v1743
          %v1775 = vmul.f32 %v1736, %v1743
          %v1776 = vmul.f32 %v1737, %v1743
          %v1777 = vld [vmem:[%s310] sm:$0x1]
          %v1779 = vlaneseq
          %v1780 = vshrl.u32 %v1779, 7
          %v1781 = vsub.s32 0, %v1780
          %v1782 = vrot.slane %v1777, %v1781
          %v1784 = vadd.f32 %v1745, %v1782
          %v1785 = vadd.f32 %v1746, %v1782
          %v1786 = vadd.f32 %v1747, %v1782
          %v1787 = vadd.f32 %v1748, %v1782
          %v1788 = vadd.f32 %v1749, %v1782
          %v1789 = vadd.f32 %v1750, %v1782
          %v1790 = vadd.f32 %v1751, %v1782
          %v1791 = vadd.f32 %v1752, %v1782
          %v1792 = vadd.f32 %v1753, %v1782
          %v1793 = vadd.f32 %v1754, %v1782
          %v1794 = vadd.f32 %v1755, %v1782
          %v1795 = vadd.f32 %v1756, %v1782
          %v1796 = vadd.f32 %v1757, %v1782
          %v1797 = vadd.f32 %v1758, %v1782
          %v1798 = vadd.f32 %v1759, %v1782
          %v1799 = vadd.f32 %v1760, %v1782
          %v1800 = vadd.f32 %v1761, %v1782
          %v1801 = vadd.f32 %v1762, %v1782
          %v1802 = vadd.f32 %v1763, %v1782
          %v1803 = vadd.f32 %v1764, %v1782
          %v1804 = vadd.f32 %v1765, %v1782
          %v1805 = vadd.f32 %v1766, %v1782
          %v1806 = vadd.f32 %v1767, %v1782
          %v1807 = vadd.f32 %v1768, %v1782
          %v1808 = vadd.f32 %v1769, %v1782
          %v1809 = vadd.f32 %v1770, %v1782
          %v1810 = vadd.f32 %v1771, %v1782
          %v1811 = vadd.f32 %v1772, %v1782
          %v1812 = vadd.f32 %v1773, %v1782
          %v1813 = vadd.f32 %v1774, %v1782
          %v1814 = vadd.f32 %v1775, %v1782
          %v1815 = vadd.f32 %v1776, %v1782
          %v1816 = vmax.f32 %v1784, 0.0
          %v1817 = vmax.f32 %v1785, 0.0
          %v1818 = vmax.f32 %v1786, 0.0
          %v1819 = vmax.f32 %v1787, 0.0
          %v1820 = vmax.f32 %v1788, 0.0
          %v1821 = vmax.f32 %v1789, 0.0
          %v1822 = vmax.f32 %v1790, 0.0
          %v1823 = vmax.f32 %v1791, 0.0
          %v1824 = vmax.f32 %v1792, 0.0
          %v1825 = vmax.f32 %v1793, 0.0
          %v1826 = vmax.f32 %v1794, 0.0
          %v1827 = vmax.f32 %v1795, 0.0
          %v1828 = vmax.f32 %v1796, 0.0
          %v1829 = vmax.f32 %v1797, 0.0
          %v1830 = vmax.f32 %v1798, 0.0
          %v1831 = vmax.f32 %v1799, 0.0
          %v1832 = vmax.f32 %v1800, 0.0
          %v1833 = vmax.f32 %v1801, 0.0
          %v1834 = vmax.f32 %v1802, 0.0
          %v1835 = vmax.f32 %v1803, 0.0
          %v1836 = vmax.f32 %v1804, 0.0
          %v1837 = vmax.f32 %v1805, 0.0
          %v1838 = vmax.f32 %v1806, 0.0
          %v1839 = vmax.f32 %v1807, 0.0
          %v1840 = vmax.f32 %v1808, 0.0
          %v1841 = vmax.f32 %v1809, 0.0
          %v1842 = vmax.f32 %v1810, 0.0
          %v1843 = vmax.f32 %v1811, 0.0
          %v1844 = vmax.f32 %v1812, 0.0
          %v1845 = vmax.f32 %v1813, 0.0
          %v1846 = vmax.f32 %v1814, 0.0
          %v1847 = vmax.f32 %v1815, 0.0
          %v1848 = vmin.f32 %v1816, 6.0
          %v1849 = vmin.f32 %v1817, 6.0
          %v1850 = vmin.f32 %v1818, 6.0
          %v1851 = vmin.f32 %v1819, 6.0
          %v1852 = vmin.f32 %v1820, 6.0
          %v1853 = vmin.f32 %v1821, 6.0
          %v1854 = vmin.f32 %v1822, 6.0
          %v1855 = vmin.f32 %v1823, 6.0
          %v1856 = vmin.f32 %v1824, 6.0
          %v1857 = vmin.f32 %v1825, 6.0
          %v1858 = vmin.f32 %v1826, 6.0
          %v1859 = vmin.f32 %v1827, 6.0
          %v1860 = vmin.f32 %v1828, 6.0
          %v1861 = vmin.f32 %v1829, 6.0
          %v1862 = vmin.f32 %v1830, 6.0
          %v1863 = vmin.f32 %v1831, 6.0
          %v1864 = vmin.f32 %v1832, 6.0
          %v1865 = vmin.f32 %v1833, 6.0
          %v1866 = vmin.f32 %v1834, 6.0
          %v1867 = vmin.f32 %v1835, 6.0
          %v1868 = vmin.f32 %v1836, 6.0
          %v1869 = vmin.f32 %v1837, 6.0
          %v1870 = vmin.f32 %v1838, 6.0
          %v1871 = vmin.f32 %v1839, 6.0
          %v1872 = vmin.f32 %v1840, 6.0
          %v1873 = vmin.f32 %v1841, 6.0
          %v1874 = vmin.f32 %v1842, 6.0
          %v1875 = vmin.f32 %v1843, 6.0
          %v1876 = vmin.f32 %v1844, 6.0
          %v1877 = vmin.f32 %v1845, 6.0
          %v1878 = vmin.f32 %v1846, 6.0
          %v1879 = vmin.f32 %v1847, 6.0
          %1880 = vst [vmem:[%s299] sm:$0xff] %v1848
          %1881 = vst [vmem:[%s299 + $0x8] sm:$0xff] %v1849
          %1882 = vst [vmem:[%s299 + $0x10] sm:$0xff] %v1850
          %1883 = vst [vmem:[%s299 + $0x18] sm:$0xff] %v1851
          %1884 = vst [vmem:[%s299 + $0x20] sm:$0xff] %v1852
          %1885 = vst [vmem:[%s299 + $0x28] sm:$0xff] %v1853
          %1886 = vst [vmem:[%s299 + $0x30] sm:$0xff] %v1854
          %1887 = vst [vmem:[%s299 + $0x38] sm:$0xff] %v1855
          %1888 = vst [vmem:[%s299 + $0x40] sm:$0xff] %v1856
          %1889 = vst [vmem:[%s299 + $0x48] sm:$0xff] %v1857
          %1890 = vst [vmem:[%s299 + $0x50] sm:$0xff] %v1858
          %1891 = vst [vmem:[%s299 + $0x58] sm:$0xff] %v1859
          %1892 = vst [vmem:[%s299 + $0x60] sm:$0xff] %v1860
          %1893 = vst [vmem:[%s299 + $0x68] sm:$0xff] %v1861
          %1894 = vst [vmem:[%s299 + $0x70] sm:$0xff] %v1862
          %1895 = vst [vmem:[%s299 + $0x78] sm:$0xff] %v1863
          %1896 = vst [vmem:[%s299 + $0x80] sm:$0xff] %v1864
          %1897 = vst [vmem:[%s299 + $0x88] sm:$0xff] %v1865
          %1898 = vst [vmem:[%s299 + $0x90] sm:$0xff] %v1866
          %1899 = vst [vmem:[%s299 + $0x98] sm:$0xff] %v1867
          %1900 = vst [vmem:[%s299 + $0xa0] sm:$0xff] %v1868
          %1901 = vst [vmem:[%s299 + $0xa8] sm:$0xff] %v1869
          %1902 = vst [vmem:[%s299 + $0xb0] sm:$0xff] %v1870
          %1903 = vst [vmem:[%s299 + $0xb8] sm:$0xff] %v1871
          %1904 = vst [vmem:[%s299 + $0xc0] sm:$0xff] %v1872
          %1905 = vst [vmem:[%s299 + $0xc8] sm:$0xff] %v1873
          %1906 = vst [vmem:[%s299 + $0xd0] sm:$0xff] %v1874
          %1907 = vst [vmem:[%s299 + $0xd8] sm:$0xff] %v1875
          %1908 = vst [vmem:[%s299 + $0xe0] sm:$0xff] %v1876
          %1909 = vst [vmem:[%s299 + $0xe8] sm:$0xff] %v1877
          %1910 = vst [vmem:[%s299 + $0xf0] sm:$0xff] %v1878
          %1911 = vst [vmem:[%s299 + $0xf8] sm:$0xff] %v1879
        $region82: #{tpu_custom_call.1} parent=69 // pred_fallthru
          _
        %s1912 = sand.u32 %s153, 1
        %s1913 = scalar_lea.sflag [#allocation5], %s1912
        %s1914 = sand.u32 %s153, 1
        %s1915 = smul.addr %s1914, 256
        %s1916 = scalar_lea.vmem [#allocation4], %s1915
        // Predicated region
        $region83: #{tpu_custom_call.1} parent=69 // pred_check
          %p1917 = pneg %p163
        $region84: #{tpu_custom_call.1} parent=69 // pred_check_branch
          %1919 = sbr.rel (%p1917) target = $region86
        $region85: #{tpu_custom_call.1} parent=69 // pred_region
          %s1921 = ssub.s32 4096, 4096
          %1922 = vsyncadd %s1913, %s1921
          %s1923 = smul.addr %s23, 32
          %s1924 = sadd.s32 %s24, %s1923
          %s1925 = smul.addr %s1924, 128
          %s1926 = scalar_lea.hbm %s4, %s1925
          %s1927 = sshll.u32 %s1916, 4
          %s1928 = int_to_ptr.vmem [resolvable:$true] %s1927
          %1933 = dma.vmem_to_hbm [thread:$0]  %s1928, 4096, %s1926, %s1913, 128, 128, 8
        $region86: #{tpu_custom_call.1} parent=69 // pred_fallthru
          _
      $region70: #{tpu_custom_call.1} parent=5 // pred_fallthru
        _
      %p1934 = scmp.le.s32.totalorder 2, %s13
      // Predicated region
      $region87: #{tpu_custom_call.1} parent=5 // pred_check
        %p1935 = pneg %p1934
      $region88: #{tpu_custom_call.1} parent=5 // pred_check_branch
        %1937 = sbr.rel (%p1935) target = $region90
      $region89: #{tpu_custom_call.1} parent=5 // pred_region
        %s1938 = ssub.s32 %s13, 2
        // Predicated region
        $region91: #{tpu_custom_call.1} parent=89 // pred_check
          %p1939 = pneg %p169
        $region92: #{tpu_custom_call.1} parent=89 // pred_check_branch
          %1941 = sbr.rel (%p1939) target = $region94
        $region93: #{tpu_custom_call.1} parent=89 // pred_region
          %s1942 = sand.u32 %s154, 1
          %s1943 = scalar_lea.sflag [#allocation5], %s1942
          %s1944 = sand.u32 %s154, 1
          %s1945 = smul.addr %s1944, 256
          %s1946 = scalar_lea.vmem [#allocation4], %s1945
          %1947 = dma.done %s1943, 4096
        $region94: #{tpu_custom_call.1} parent=89 // pred_fallthru
          _
      $region90: #{tpu_custom_call.1} parent=5 // pred_fallthru
        _
    $region6: #{tpu_custom_call.1} parent=1 // loop_footer
      %s17 = sadd.s32 1, %s13
    $region7: #{tpu_custom_call.1} parent=1 // loop_footer_branch
      %12 = sbr.rel target = $region3
    $region8: #{tpu_custom_call.1} parent=1 // loop_exit
      _
    %1948 = vsyncpa [#allocation5], 1
    %s1949 = scalar_lea.sflag [#allocation5], 1
    %1950 = vsyncpa %s1949, 1

</llo_original>
